<compile_context>
chip_gen: v5e
topology: v5e:2x2
jax: 0.10.0
libtpu: 0.0.40
codegen_flags: <defaults>
</compile_context>

<pallas_src>
import functools

import numpy as np
import jax
import jax.numpy as jnp
from jax.experimental import pallas as pl
from jax.experimental.pallas import tpu as pltpu

try:  # C implementation of the Hungarian algorithm if available
    from scipy.optimize import linear_sum_assignment as _scipy_lsa
except Exception:  # pragma: no cover
    _scipy_lsa = None

ALPHA, BETA, GAMMA = 2.0, 1.0, 0.5
NUM_CLASSES = 3
LANE = 128
_VMEM_LIMIT = 48 * 1024 * 1024  # fits v7x (64 MiB phys); harmless on v5e/v6e


def _pick_tile(n, candidates=(512, 256, 128)):
    for c in candidates:
        if n % c == 0:
            return c
    return n


# ----------------------------------------------------------------------------
# Kernel 1: weighted pairwise cost matrix (the cdist hot path)
#   pred_ref : (1, TI, 7)  prediction rows  (rows in sublanes)
#   tgtT_ref : (1, 5, TJ)  target columns   (cols in lanes)
#   cost_ref : (1, TI, TJ) lane-dense cost tile
# ----------------------------------------------------------------------------
def _cost_kernel(pred_ref, tgtT_ref, cost_ref, *, alpha, beta, gamma):
    pred = pred_ref[0]                           # (TI, 7)
    tgtT = tgtT_ref[0]                           # (5, TJ)
    tj = tgtT.shape[1]

    # Fold the loss weights (and the -2 of the matmul distance form) into the
    # small (N, d)/(d, N) operands: no full (TI, TJ) map is scaled afterwards
    # (kernel 1 is VALU-bound at scale, MXU has slack).
    pa_conf = pred[:, 0:1] * alpha               # (TI, 1)
    pa_boxes = pred[:, 1:4] * beta               # (TI, 3)
    pa_cls = pred[:, 4:7] * gamma                # (TI, 3)

    ta_conf = tgtT[0:1, :] * alpha               # (1, TJ)
    ta_boxes = tgtT[1:4, :] * beta               # (3, TJ)
    cls_id = tgtT[4:5, :].astype(jnp.int32)      # (1, TJ)
    cls_iota = jax.lax.broadcasted_iota(jnp.int32, (NUM_CLASSES, tj), 0)
    ta_onehot = jnp.where(cls_iota == cls_id,
                          jnp.float32(gamma), jnp.float32(0.0))       # (3, TJ)

    def pairwise(a, b, sq_b=None):
        # w*||a_i - b_j||, weight w already folded into a and b.
        sq_a = jnp.sum(a * a, axis=1, keepdims=True)                  # (TI, 1)
        if sq_b is None:
            sq_b = jnp.sum(b * b, axis=0, keepdims=True)              # (1, TJ)
        cross = jnp.dot(a * (-2.0), b,
                        preferred_element_type=jnp.float32)           # MXU
        # clamp >= 0 to avoid sqrt(NaN) from round-off of the matmul form
        return jnp.sqrt(jnp.maximum(sq_a + sq_b + cross, 0.0))

    box_dist = pairwise(pa_boxes, ta_boxes)
    # one-hot rows have unit norm -> ||gamma*onehot||^2 == gamma^2 (constant)
    cls_dist = pairwise(pa_cls, ta_onehot, sq_b=jnp.float32(gamma * gamma))
    conf_dist = jnp.abs(pa_conf - ta_conf)       # d = 1 -> plain broadcast abs

    cost_ref[0] = conf_dist + box_dist + cls_dist


def _compute_cost(output_p, targetT_p, alpha, beta, gamma, tile_i, tile_j):
    B, n_pad, _ = output_p.shape
    grid = (B, n_pad // tile_i, n_pad // tile_j)
    kern = functools.partial(_cost_kernel, alpha=alpha, beta=beta, gamma=gamma)
    return pl.pallas_call(
        kern,
        out_shape=jax.ShapeDtypeStruct((B, n_pad, n_pad), jnp.float32),
        grid=grid,
        in_specs=[pl.BlockSpec((1, tile_i, 7), lambda b, i, j: (b, i, 0)),
                  pl.BlockSpec((1, 5, tile_j), lambda b, i, j: (b, 0, j))],
        out_specs=pl.BlockSpec((1, tile_i, tile_j), lambda b, i, j: (b, i, j)),
        compiler_params=pltpu.CompilerParams(
            dimension_semantics=("parallel", "parallel", "arbitrary"),
            vmem_limit_bytes=_VMEM_LIMIT),
    )(output_p, targetT_p)


# ----------------------------------------------------------------------------
# Kernel 2: matched-row MSE + BCE + CrossEntropy, lane-dense per-row output
#   predT_ref : (1, 7, TI)   lane-major predictions (this row tile)
#   tgtT_ref  : (1, 5, Np)   lane-major targets (full, resident)
#   conf_ref  : (1, 1, Np)   all prediction confidences (for BCE-over-all)
#   idx_ref   : (1, 1, TI)   int32 matched target column per prediction row
#   out_ref   : (1, 1, TI)   per-row loss (padded rows -> 0)
# ----------------------------------------------------------------------------
def _loss_kernel(predT_ref, tgtT_ref, conf_ref, idx_ref, out_ref, *,
                 alpha, n_real, tile_i):
    i_tile = pl.program_id(1)

    predT = predT_ref[0]                         # (7, TI)
    tgtT = tgtT_ref[0]                           # (5, Np)
    p_all = conf_ref[0]                          # (1, Np)
    idx = idx_ref[0]                             # (1, TI) int32
    n_pad = tgtT.shape[1]

    # Permutation strip built in-kernel: only O(Np * TI) lives per step (never
    # the full (Np, Np) one-hot); the gather itself runs on the MXU.
    j_iota = jax.lax.broadcasted_iota(jnp.int32, (n_pad, tile_i), 0)
    perm = (j_iota == idx).astype(jnp.float32)                        # (Np, TI)
    matched = jnp.dot(tgtT, perm, preferred_element_type=jnp.float32)  # (5, TI)

    pred_conf = predT[0:1, :]                    # (1, TI)
    pred_boxes = predT[1:4, :]                   # (3, TI)
    logits = predT[4:7, :]                       # (3, TI)

    m_conf = matched[0:1, :]                     # (1, TI)
    m_boxes = matched[1:4, :]                    # (3, TI)
    m_cls = (matched[4:5, :] + 0.5).astype(jnp.int32)   # round, not truncate

    # MSELoss over the 3 box coordinates.
    db = pred_boxes - m_boxes
    mse = jnp.sum(db * db, axis=0, keepdims=True) * (1.0 / 3.0)       # (1, TI)

    # BCELoss terms: like torch.nn.BCELoss the logs are clamped at -100; the
    # inner clamps keep p <= 0 / p >= 1 NaN-free.
    logp = jnp.maximum(jnp.log(jnp.maximum(pred_conf, 0.0)), -100.0)
    log1mp = jnp.maximum(jnp.log(jnp.maximum(1.0 - pred_conf, 0.0)), -100.0)
    bce_matched = -(m_conf * logp + (1.0 - m_conf) * log1mp)          # (1, TI)

    # CrossEntropyLoss(logits_i, class_id of matched target).
    mx = jnp.max(logits, axis=0, keepdims=True)
    lse = mx + jnp.log(jnp.sum(jnp.exp(logits - mx), axis=0, keepdims=True))
    cls_iota = jax.lax.broadcasted_iota(jnp.int32, (NUM_CLASSES, tile_i), 0)
    picked = jnp.sum(jnp.where(cls_iota == m_cls, logits, 0.0),
                     axis=0, keepdims=True)
    ce = lse - picked                                                 # (1, TI)

    # Unmatched branch: alpha * BCELoss(all pred conf, all target conf) / N.
    # Padded rows have pred_conf == t_conf == 0 and contribute exactly 0, so
    # dividing by the real N keeps torch semantics.
    t_all = tgtT[0:1, :]                                              # (1, Np)
    logp_all = jnp.maximum(jnp.log(jnp.maximum(p_all, 0.0)), -100.0)
    log1mp_all = jnp.maximum(jnp.log(jnp.maximum(1.0 - p_all, 0.0)), -100.0)
    bce_all = jnp.sum(-(t_all * logp_all + (1.0 - t_all) * log1mp_all),
                      axis=1, keepdims=True) * (1.0 / n_real)         # (1, 1)

    mask = (m_conf > 0.1).astype(jnp.float32)                         # (1, TI)
    row = jax.lax.broadcasted_iota(jnp.int32, (1, tile_i), 1) + i_tile * tile_i
    valid = (row < n_real).astype(jnp.float32)                        # (1, TI)

    per_row = valid * (mask * (mse + bce_matched + ce)
                       + (1.0 - mask) * (alpha * bce_all))            # (1, TI)
    out_ref[0] = per_row


def _compute_loss_rows(predT_p, tgtT_p, conf_row, idx, alpha, n_real, tile_i):
    B, _, n_pad = predT_p.shape
    n_i = n_pad // tile_i
    kern = functools.partial(_loss_kernel, alpha=alpha, n_real=n_real,
                             tile_i=tile_i)
    return pl.pallas_call(
        kern,
        out_shape=jax.ShapeDtypeStruct((B * n_i, 1, tile_i), jnp.float32),
        grid=(B, n_i),
        in_specs=[pl.BlockSpec((1, 7, tile_i), lambda b, i: (b, 0, i)),
                  pl.BlockSpec((1, 5, n_pad), lambda b, i: (b, 0, 0)),
                  pl.BlockSpec((1, 1, n_pad), lambda b, i: (b, 0, 0)),
                  pl.BlockSpec((1, 1, tile_i), lambda b, i: (b, 0, i))],
        out_specs=pl.BlockSpec((1, 1, tile_i),
                               lambda b, i: (b * n_i + i, 0, 0)),
        compiler_params=pltpu.CompilerParams(
            dimension_semantics=("parallel", "parallel"),
            vmem_limit_bytes=_VMEM_LIMIT),
    )(predT_p, tgtT_p, conf_row, idx)


# ----------------------------------------------------------------------------
# jitted pre/post segments around the host matching round-trip
# ----------------------------------------------------------------------------
@functools.partial(jax.jit, static_argnames=("alpha", "beta", "gamma",
                                              "n_pad", "tile_i", "tile_j"))
def _prepare_and_cost(output, target, alpha, beta, gamma, n_pad, tile_i, tile_j):
    B, N, _ = output.shape
    pad = n_pad - N
    # zero padding: padded rows have confidence 0 on both sides.
    output_p = jnp.pad(output, ((0, 0), (0, pad), (0, 0)))
    target_p = jnp.pad(target, ((0, 0), (0, pad), (0, 0)))
    predT_p = jnp.transpose(output_p, (0, 2, 1))   # (B, 7, Np) lane-major
    tgtT_p = jnp.transpose(target_p, (0, 2, 1))    # (B, 5, Np) lane-major
    conf_row = predT_p[:, 0:1, :]                  # (B, 1, Np)
    cost = _compute_cost(output_p, tgtT_p, alpha, beta, gamma, tile_i, tile_j)
    return cost, predT_p, tgtT_p, conf_row


@functools.partial(jax.jit, static_argnames=("alpha", "n_real", "tile_i"))
def _finalize_loss(predT_p, tgtT_p, conf_row, idx, alpha, n_real, tile_i):
    B = predT_p.shape[0]
    rows = _compute_loss_rows(predT_p, tgtT_p, conf_row, idx,
                              alpha, n_real, tile_i)
    return jnp.sum(rows) / B


# ----------------------------------------------------------------------------
# Host-side Hungarian matching.
# TODO(synk): linear_sum_assignment is a sequential combinatorial algorithm with
# no clean Pallas equivalent; it runs on host between the two kernels (scipy C
# implementation when available, pure-python fallback otherwise).
# ----------------------------------------------------------------------------
def _hungarian(cost):
    cost = np.asarray(cost, dtype=np.float64)
    n, m = cost.shape
    INF = float("inf")
    u = [0.0] * (n + 1)
    v = [0.0] * (m + 1)
    p = [0] * (m + 1)
    way = [0] * (m + 1)
    for i in range(1, n + 1):
        p[0] = i
        j0 = 0
        minv = [INF] * (m + 1)
        used = [False] * (m + 1)
        while True:
            used[j0] = True
            i0 = p[j0]
            delta = INF
            j1 = 0
            for j in range(1, m + 1):
                if not used[j]:
                    cur = cost[i0 - 1][j - 1] - u[i0] - v[j]
                    if cur < minv[j]:
                        minv[j] = cur
                        way[j] = j0
                    if minv[j] < delta:
                        delta = minv[j]
                        j1 = j
            for j in range(m + 1):
                if used[j]:
                    u[p[j]] += delta
                    v[j] -= delta
                else:
                    minv[j] -= delta
            j0 = j1
            if p[j0] == 0:
                break
        while True:
            j1 = way[j0]
            p[j0] = p[j1]
            j0 = j1
            if j0 == 0:
                break
    rows, cols = [], []
    for j in range(1, m + 1):
        if p[j] != 0:
            rows.append(p[j] - 1)
            cols.append(j - 1)
    return np.array(rows, dtype=np.int64), np.array(cols, dtype=np.int64)


def _assign(cost):
    if _scipy_lsa is not None:
        rows, cols = _scipy_lsa(cost)
        return np.asarray(rows), np.asarray(cols)
    return _hungarian(cost)


# ----------------------------------------------------------------------------
# Wrapper = LocalizationLoss.forward
# ----------------------------------------------------------------------------
def localization_loss(output, target, alpha=ALPHA, beta=BETA, gamma=GAMMA):
    B, N, _ = output.shape
    n_pad = max(LANE, ((N + LANE - 1) // LANE) * LANE)   # lane-dense N
    tile_cost = _pick_tile(n_pad)                        # kernel-1 tiles
    tile_loss = _pick_tile(n_pad, (256, 128))            # kernel-2 row tiles

    cost, predT_p, tgtT_p, conf_row = _prepare_and_cost(
        output, target, alpha=alpha, beta=beta, gamma=gamma,
        n_pad=n_pad, tile_i=tile_cost, tile_j=tile_cost)

    # Kick off the D2H copy of the cost map while the host sets up matching.
    try:
        cost.copy_to_host_async()
    except Exception:
        pass
    cost_np = np.asarray(cost)[:, :N, :N]   # padded rows/cols never reach the solver

    # Host matching; only (B, Np) int32 matched columns travel back on-device.
    col_of_row = np.zeros((B, n_pad), dtype=np.int32)
    for b in range(B):
        rows, cols = _assign(cost_np[b])
        col_of_row[b, rows] = cols
    idx = jnp.asarray(col_of_row.reshape(B, 1, n_pad))

    return _finalize_loss(predT_p, tgtT_p, conf_row, idx,
                          alpha=alpha, n_real=N, tile_i=tile_loss)


# ----------------------------------------------------------------------------
# Pure numpy reference (faithful to the PyTorch module) for validation.
# ----------------------------------------------------------------------------
def _reference_loss(output, target, alpha, beta, gamma):
    output = np.asarray(output, dtype=np.float64)
    target = np.asarray(target, dtype=np.float64)
    B, N, _ = output.shape
    total = 0.0
    for b in range(B):
        pred, tgt = output[b], target[b]
        pred_cls = pred[:, 4:]
        cls_oh = np.eye(NUM_CLASSES)[tgt[:, 4].astype(int)]
        pred_conf, tgt_conf = pred[:, 0], tgt[:, 0]
        pred_boxes, tgt_boxes = pred[:, 1:4], tgt[:, 1:4]
        dist = np.linalg.norm(pred_boxes[:, None, :] - tgt_boxes[None, :, :], axis=-1)
        cdist = np.linalg.norm(pred_cls[:, None, :] - cls_oh[None, :, :], axis=-1)
        pdist = np.abs(pred_conf[:, None] - tgt_conf[None, :])
        mask = tgt_conf > 0.1
        rows, cols = _assign(alpha * pdist + beta * dist + gamma * cdist)
        for i, j in zip(rows, cols):
            if mask[j]:
                mse = np.mean((pred_boxes[i] - tgt_boxes[j]) ** 2)
                p, t = pred_conf[i], tgt_conf[j]
                bce = -(t * max(np.log(p), -100.0) + (1 - t) * max(np.log(1 - p), -100.0))
                logits = pred[i, 4:]
                lse = np.log(np.sum(np.exp(logits - logits.max()))) + logits.max()
                ce = lse - logits[int(tgt[j, 4])]
                total += mse + bce + ce
            else:
                bce_all = np.mean(
                    -(tgt_conf * np.maximum(np.log(pred_conf), -100.0)
                      + (1 - tgt_conf) * np.maximum(np.log(1 - pred_conf), -100.0)))
                total += alpha * bce_all
    return total / B


if __name__ == "__main__":
    B, N = 2, 8
    key = jax.random.PRNGKey(0)
    k1, k2, k3, k4, k5, k6 = jax.random.split(key, 6)

    # predictions: confidence in (0,1), boxes, class logits
    pred_conf = jax.nn.sigmoid(jax.random.normal(k1, (B, N, 1)))
    pred_boxes = jax.nn.sigmoid(jax.random.normal(k2, (B, N, 3)))
    pred_logits = jax.random.normal(k3, (B, N, NUM_CLASSES))
    output = jnp.concatenate([pred_conf, pred_boxes, pred_logits], axis=-1).astype(jnp.float32)

    # targets: confidence in [0,1), boxes, class id in {0,1,2} stored as float
    tgt_conf = jax.random.uniform(k4, (B, N, 1))
    tgt_boxes = jax.random.uniform(k5, (B, N, 3))
    tgt_cls = jax.random.randint(k6, (B, N, 1), 0, NUM_CLASSES).astype(jnp.float32)
    target = jnp.concatenate([tgt_conf, tgt_boxes, tgt_cls], axis=-1).astype(jnp.float32)

    loss = localization_loss(output, target)
    loss = jax.block_until_ready(loss)

    ref = _reference_loss(np.asarray(output), np.asarray(target), ALPHA, BETA, GAMMA)
    assert np.isfinite(float(loss))
    assert abs(float(loss) - ref) <= 1e-3 * max(1.0, abs(ref)), (float(loss), ref)
    print("KERNEL_OK")
</pallas_src>

<mosaic_0001>
module attributes {stable_mosaic.version = 11 : i64} {
  func.func @_cost_kernel(%arg0: i32, %arg1: i32, %arg2: i32, %arg3: memref<1x128x7xf32, #tpu.memory_space<vmem>>, %arg4: memref<1x5x128xf32, #tpu.memory_space<vmem>>, %arg5: memref<1x128x128xf32, #tpu.memory_space<vmem>>) attributes {dimension_semantics = [#tpu.dimension_semantics<parallel>, #tpu.dimension_semantics<parallel>, #tpu.dimension_semantics<arbitrary>], iteration_bounds = array<i64: 2, 1, 1>, scalar_prefetch = 0 : i64, scratch_operands = 0 : i64, tpu.core_type = #tpu.core_type<tc>, window_params = [{transform_indices = @transform_0, window_bounds = array<i64: 1, 128, 7>}, {transform_indices = @transform_1, window_bounds = array<i64: 1, 5, 128>}, {transform_indices = @transform_2, window_bounds = array<i64: 1, 128, 128>}]} {
    %c0 = arith.constant 0 : index
    %c0_0 = arith.constant 0 : index
    %c0_1 = arith.constant 0 : index
    %0 = vector.load %arg3[%c0, %c0_0, %c0_1] : memref<1x128x7xf32, #tpu.memory_space<vmem>>, vector<1x128x7xf32>
    %1 = vector.shape_cast %0 : vector<1x128x7xf32> to vector<128x7xf32>
    %c0_2 = arith.constant 0 : index
    %c0_3 = arith.constant 0 : index
    %c0_4 = arith.constant 0 : index
    %2 = vector.load %arg4[%c0_2, %c0_3, %c0_4] : memref<1x5x128xf32, #tpu.memory_space<vmem>>, vector<1x5x128xf32>
    %3 = vector.shape_cast %2 : vector<1x5x128xf32> to vector<5x128xf32>
    %4 = vector.extract_strided_slice %1 {offsets = [0, 0], sizes = [128, 1], strides = [1, 1]} : vector<128x7xf32> to vector<128x1xf32>
    %cst = arith.constant 2.000000e+00 : f32
    %5 = vector.broadcast %cst : f32 to vector<128x1xf32>
    %6 = arith.mulf %4, %5 : vector<128x1xf32>
    %7 = vector.extract_strided_slice %1 {offsets = [0, 1], sizes = [128, 3], strides = [1, 1]} : vector<128x7xf32> to vector<128x3xf32>
    %cst_5 = arith.constant 1.000000e+00 : f32
    %8 = vector.broadcast %cst_5 : f32 to vector<128x3xf32>
    %9 = arith.mulf %7, %8 : vector<128x3xf32>
    %10 = vector.extract_strided_slice %1 {offsets = [0, 4], sizes = [128, 3], strides = [1, 1]} : vector<128x7xf32> to vector<128x3xf32>
    %cst_6 = arith.constant 5.000000e-01 : f32
    %11 = vector.broadcast %cst_6 : f32 to vector<128x3xf32>
    %12 = arith.mulf %10, %11 : vector<128x3xf32>
    %13 = vector.extract_strided_slice %3 {offsets = [0, 0], sizes = [1, 128], strides = [1, 1]} : vector<5x128xf32> to vector<1x128xf32>
    %cst_7 = arith.constant 2.000000e+00 : f32
    %14 = vector.broadcast %cst_7 : f32 to vector<1x128xf32>
    %15 = arith.mulf %13, %14 : vector<1x128xf32>
    %16 = vector.extract_strided_slice %3 {offsets = [1, 0], sizes = [3, 128], strides = [1, 1]} : vector<5x128xf32> to vector<3x128xf32>
    %cst_8 = arith.constant 1.000000e+00 : f32
    %17 = vector.broadcast %cst_8 : f32 to vector<3x128xf32>
    %18 = arith.mulf %16, %17 : vector<3x128xf32>
    %19 = vector.extract_strided_slice %3 {offsets = [4, 0], sizes = [1, 128], strides = [1, 1]} : vector<5x128xf32> to vector<1x128xf32>
    %20 = arith.fptosi %19 : vector<1x128xf32> to vector<1x128xi32>
    %21 = tpu.iota {dimensions = array<i32: 0>} : vector<3x128xi32>
    %22 = vector.broadcast %20 : vector<1x128xi32> to vector<3x128xi32>
    %23 = arith.cmpi eq, %21, %22 : vector<3x128xi32>
    %cst_9 = arith.constant 5.000000e-01 : f32
    %cst_10 = arith.constant 0.000000e+00 : f32
    %24 = vector.broadcast %cst_9 : f32 to vector<3x128xf32>
    %25 = vector.broadcast %cst_10 : f32 to vector<3x128xf32>
    %26 = arith.select %23, %24, %25 : vector<3x128xi1>, vector<3x128xf32>
    %27 = arith.mulf %9, %9 : vector<128x3xf32>
    %cst_11 = arith.constant dense<0.000000e+00> : vector<128xf32>
    %28 = vector.multi_reduction <add>, %27, %cst_11 [1] : vector<128x3xf32> to vector<128xf32>
    %29 = vector.shape_cast %28 : vector<128xf32> to vector<128x1xf32>
    %30 = arith.mulf %18, %18 : vector<3x128xf32>
    %cst_12 = arith.constant dense<0.000000e+00> : vector<128xf32>
    %31 = vector.multi_reduction <add>, %30, %cst_12 [0] : vector<3x128xf32> to vector<128xf32>
    %32 = vector.shape_cast %31 : vector<128xf32> to vector<1x128xf32>
    %cst_13 = arith.constant -2.000000e+00 : f32
    %33 = vector.broadcast %cst_13 : f32 to vector<128x3xf32>
    %34 = arith.mulf %9, %33 : vector<128x3xf32>
    %cst_14 = arith.constant dense<0.000000e+00> : vector<128x128xf32>
    %35 = tpu.matmul %34, %18, %cst_14 {dimension_numbers = #tpu.dot_dimension_numbers<[1], [0], [0], [1], [0, 0, 1, 1], [], []>} : vector<128x3xf32>, vector<3x128xf32>, vector<128x128xf32> -> vector<128x128xf32>
    %36 = vector.broadcast %29 : vector<128x1xf32> to vector<128x128xf32>
    %37 = vector.broadcast %32 : vector<1x128xf32> to vector<128x128xf32>
    %38 = arith.addf %36, %37 : vector<128x128xf32>
    %39 = arith.addf %38, %35 : vector<128x128xf32>
    %cst_15 = arith.constant 0.000000e+00 : f32
    %40 = vector.broadcast %cst_15 : f32 to vector<128x128xf32>
    %41 = arith.maximumf %39, %40 : vector<128x128xf32>
    %42 = math.sqrt %41 : vector<128x128xf32>
    %43 = arith.mulf %12, %12 : vector<128x3xf32>
    %cst_16 = arith.constant dense<0.000000e+00> : vector<128xf32>
    %44 = vector.multi_reduction <add>, %43, %cst_16 [1] : vector<128x3xf32> to vector<128xf32>
    %45 = vector.shape_cast %44 : vector<128xf32> to vector<128x1xf32>
    %cst_17 = arith.constant -2.000000e+00 : f32
    %46 = vector.broadcast %cst_17 : f32 to vector<128x3xf32>
    %47 = arith.mulf %12, %46 : vector<128x3xf32>
    %cst_18 = arith.constant dense<0.000000e+00> : vector<128x128xf32>
    %48 = tpu.matmul %47, %26, %cst_18 {dimension_numbers = #tpu.dot_dimension_numbers<[1], [0], [0], [1], [0, 0, 1, 1], [], []>} : vector<128x3xf32>, vector<3x128xf32>, vector<128x128xf32> -> vector<128x128xf32>
    %cst_19 = arith.constant 2.500000e-01 : f32
    %49 = vector.broadcast %cst_19 : f32 to vector<128x1xf32>
    %50 = arith.addf %45, %49 : vector<128x1xf32>
    %51 = vector.broadcast %50 : vector<128x1xf32> to vector<128x128xf32>
    %52 = arith.addf %51, %48 : vector<128x128xf32>
    %cst_20 = arith.constant 0.000000e+00 : f32
    %53 = vector.broadcast %cst_20 : f32 to vector<128x128xf32>
    %54 = arith.maximumf %52, %53 : vector<128x128xf32>
    %55 = math.sqrt %54 : vector<128x128xf32>
    %56 = vector.broadcast %6 : vector<128x1xf32> to vector<128x128xf32>
    %57 = vector.broadcast %15 : vector<1x128xf32> to vector<128x128xf32>
    %58 = arith.subf %56, %57 : vector<128x128xf32>
    %59 = math.absf %58 : vector<128x128xf32>
    %60 = arith.addf %59, %42 : vector<128x128xf32>
    %61 = arith.addf %60, %55 : vector<128x128xf32>
    %c0_21 = arith.constant 0 : index
    %c0_22 = arith.constant 0 : index
    %c0_23 = arith.constant 0 : index
    %62 = vector.load %arg5[%c0_21, %c0_22, %c0_23] : memref<1x128x128xf32, #tpu.memory_space<vmem>>, vector<1x128x128xf32>
    %63 = vector.shape_cast %62 : vector<1x128x128xf32> to vector<128x128xf32>
    %64 = vector.shape_cast %61 : vector<128x128xf32> to vector<1x128x128xf32>
    tpu.vector_store %arg5[%c0_21, %c0_22, %c0_23], %64 {strides = array<i32>} : memref<1x128x128xf32, #tpu.memory_space<vmem>>, vector<1x128x128xf32>,
    return
  }
  func.func @transform_0(%arg0: i32, %arg1: i32, %arg2: i32) -> (i32, i32, i32) {
    %c0_i32 = arith.constant 0 : i32
    %c0_i32_0 = arith.constant 0 : i32
    return %arg0, %arg1, %c0_i32 : i32, i32, i32
  }
  func.func @transform_1(%arg0: i32, %arg1: i32, %arg2: i32) -> (i32, i32, i32) {
    %c0_i32 = arith.constant 0 : i32
    %c0_i32_0 = arith.constant 0 : i32
    return %arg0, %c0_i32, %arg2 : i32, i32, i32
  }
  func.func @transform_2(%arg0: i32, %arg1: i32, %arg2: i32) -> (i32, i32, i32) {
    %c0_i32 = arith.constant 0 : i32
    return %arg0, %arg1, %arg2 : i32, i32, i32
  }
}

</mosaic_0001>

<llo_original>
// kernel: _prepare_and_cost.1
$region0: #{_prepare_and_cost.1}
  #allocation0 [shape = 'u32[]', space=smem, size = 0x4, offset = 0x4, fixed_abs, tag = 'smem constant byte address 0x4 - core index']
  #allocation1 [shape = 'u32[72,128]{1,0:T(1,128)}', space=vmem, size = 0x9000, scoped, tag = 'internal scratch']
  %s0 = inlined_call_operand.vmem [shape: f32[2,128,7], index: 0, kind: input, shape index: {}]
  %s1 = inlined_call_operand.vmem [shape: f32[2,5,128], index: 1, kind: input, shape index: {}]
  %s2 = inlined_call_operand.hbm [shape: f32[2,128,128], index: 2, kind: output, shape index: {}]
  %s3 = sld [smem:[#allocation0]]
  $region41: #{_prepare_and_cost.1} parent=0
    _
  %s5 = ssub.s32 1, %s3
  %s6 = scalar_select 0, %s5, %s3
  $region1: #{_prepare_and_cost.1} parent=0
    #allocation2 [shape = 'u8[131072]{0}', space=vmem, size = 0x20000, scoped, tag = 'output window, operand 0']
    #allocation3 [shape = 's32[2]{0}', space=sflag, size = 0x8, scoped, tag = 'scoped memory for _prepare_and_cost.1']
    %7 = vsyncpa [#allocation3], 0
    %s8 = scalar_lea.sflag [#allocation3], 1
    %9 = vsyncpa %s8, 0
    loop: start=0, step=1, limit=4
    $region2: #{_prepare_and_cost.1} parent=1 // loop_pre_header
      _
    $region3: #{_prepare_and_cost.1} parent=1 // loop_header
      %s11 = sphi 0, %s15
      %p12 = scmp.ge.s32.totalorder %s11, 4
      %s18 = sphi 0, %s37
      %s19 = sphi 0, %s33
      %s20 = sphi 0, %s29
      %s21 = sphi 0, %s18
      %s22 = sphi 0, %s19
      %s23 = sphi 0, %s20
      %s24 = sphi 0, %s21
      %s25 = sphi 0, %s22
      %s26 = sphi 0, %s23
      %s42 = sphi 0, %s44
      %s45 = sphi 0, %s42
      %s46 = sphi 0, %s45
      %s62 = sphi 0, %s46
      %s70 = sphi 0, %s72
      %s73 = sphi 0, %s70
      %s74 = sphi 0, %s73
      %s90 = sphi 0, %s74
      %s100 = sphi 0, %s102
      %s103 = sphi 0, %s100
      %s104 = sphi 0, %s103
      %s120 = sphi 0, %s104
    $region4: #{_prepare_and_cost.1} parent=1 // loop_header_branch
      %14 = sbr.rel (%p12) target = $region8
    $region5: #{_prepare_and_cost.1} parent=1 // loop_body
      %s16 = ssub.s32 %s11, 1
      %s17 = ssub.s32 %s11, 2
      %s27 = sadd.s32 1, %s20
      %p28 = scmp.ge.s32.totalorder %s27, 1
      %s29 = scalar_select %p28, 0, %s27
      %s30 = sadd.s32 1, %s19
      %s31 = scalar_select %p28, %s30, %s19
      %p32 = scmp.ge.s32.totalorder %s31, 1
      %s33 = scalar_select %p32, 0, %s31
      %s34 = sadd.s32 1, %s18
      %s35 = scalar_select %p32, %s34, %s18
      %p36 = scmp.ge.s32.totalorder %s35, 2
      %s37 = scalar_select %p36, 0, %s35
      %s38 = ssub.s32 %s18, %s37
      %s39 = ssub.s32 %s19, %s33
      %s40 = sor.u32 %s38, %s39
      %p41 = scmp.eq.s32.totalorder %s40, 0
      %s43 = sadd.s32 %s42, 1
      %s44 = scalar_select %p41, %s42, %s43
      %p47 = pneg %p41
      %p48 = scmp.eq.s32.totalorder %s11, 1
      %p49 = por %p47, %p48
      %p50 = scmp.ne.s32.totalorder %s42, %s45
      %p51 = scmp.eq.s32.totalorder %s11, 0
      %p52 = por %p50, %p51
      %p53 = scmp.ne.s32.totalorder %s42, %s45
      %p54 = scmp.eq.s32.totalorder %s16, 1
      %p55 = por %p53, %p54
      %p56 = scmp.ne.s32.totalorder %s45, %s46
      %p57 = scmp.eq.s32.totalorder %s16, 0
      %p58 = por %p56, %p57
      %p59 = scmp.ne.s32.totalorder %s45, %s46
      %p60 = scmp.eq.s32.totalorder %s17, 1
      %p61 = por %p59, %p60
      %p63 = scmp.ne.s32.totalorder %s46, %s62
      %p64 = scmp.eq.s32.totalorder %s17, 0
      %p65 = por %p63, %p64
      %s66 = ssub.s32 %s18, %s37
      %s67 = ssub.s32 %s20, %s29
      %s68 = sor.u32 %s66, %s67
      %p69 = scmp.eq.s32.totalorder %s68, 0
      %s71 = sadd.s32 %s70, 1
      %s72 = scalar_select %p69, %s70, %s71
      %p75 = pneg %p69
      %p76 = scmp.eq.s32.totalorder %s11, 1
      %p77 = por %p75, %p76
      %p78 = scmp.ne.s32.totalorder %s70, %s73
      %p79 = scmp.eq.s32.totalorder %s11, 0
      %p80 = por %p78, %p79
      %p81 = scmp.ne.s32.totalorder %s70, %s73
      %p82 = scmp.eq.s32.totalorder %s16, 1
      %p83 = por %p81, %p82
      %p84 = scmp.ne.s32.totalorder %s73, %s74
      %p85 = scmp.eq.s32.totalorder %s16, 0
      %p86 = por %p84, %p85
      %p87 = scmp.ne.s32.totalorder %s73, %s74
      %p88 = scmp.eq.s32.totalorder %s17, 1
      %p89 = por %p87, %p88
      %p91 = scmp.ne.s32.totalorder %s74, %s90
      %p92 = scmp.eq.s32.totalorder %s17, 0
      %p93 = por %p91, %p92
      %s94 = ssub.s32 %s18, %s37
      %s95 = ssub.s32 %s19, %s33
      %s96 = sor.u32 %s94, %s95
      %s97 = ssub.s32 %s20, %s29
      %s98 = sor.u32 %s96, %s97
      %p99 = scmp.eq.s32.totalorder %s98, 0
      %s101 = sadd.s32 %s100, 1
      %s102 = scalar_select %p99, %s100, %s101
      %p105 = pneg %p99
      %p106 = scmp.eq.s32.totalorder %s11, 1
      %p107 = por %p105, %p106
      %p108 = scmp.ne.s32.totalorder %s100, %s103
      %p109 = scmp.eq.s32.totalorder %s11, 0
      %p110 = por %p108, %p109
      %p111 = scmp.ne.s32.totalorder %s100, %s103
      %p112 = scmp.eq.s32.totalorder %s16, 1
      %p113 = por %p111, %p112
      %p114 = scmp.ne.s32.totalorder %s103, %s104
      %p115 = scmp.eq.s32.totalorder %s16, 0
      %p116 = por %p114, %p115
      %p117 = scmp.ne.s32.totalorder %s103, %s104
      %p118 = scmp.eq.s32.totalorder %s17, 1
      %p119 = por %p117, %p118
      %p121 = scmp.ne.s32.totalorder %s104, %s120
      %p122 = scmp.eq.s32.totalorder %s17, 0
      %p123 = por %p121, %p122
      %p124 = scmp.le.s32.totalorder 1, %s11
      %p125 = scmp.lt.s32.totalorder %s11, 3
      %p126 = pnand %p124, %p125
      %p127 = pneg %p126
      // Predicated region
      $region9: #{_prepare_and_cost.1} parent=5 // pred_check
        _
      $region10: #{_prepare_and_cost.1} parent=5 // pred_check_branch
        %129 = sbr.rel (%p126) target = $region12
      $region11: #{_prepare_and_cost.1} parent=5 // pred_region
        %s130 = ssub.s32 %s11, 1
      $region12: #{_prepare_and_cost.1} parent=5 // pred_fallthru
        _
      %p131 = scmp.lt.s32.totalorder %s11, 2
      // Predicated region
      $region13: #{_prepare_and_cost.1} parent=5 // pred_check
        %p132 = pneg %p131
      $region14: #{_prepare_and_cost.1} parent=5 // pred_check_branch
        %134 = sbr.rel (%p132) target = $region16
      $region15: #{_prepare_and_cost.1} parent=5 // pred_region
        // Predicated region
        $region17: #{_prepare_and_cost.1} parent=15 // pred_check
          %p135 = pneg %p52
        $region18: #{_prepare_and_cost.1} parent=15 // pred_check_branch
          %137 = sbr.rel (%p135) target = $region20
        $region19: #{_prepare_and_cost.1} parent=15 // pred_region
          %s138 = smul.u32 16, %s19
          %p139 = scmp.lt.s32.totalorder %s18, 1
          %s140 = scalar_select %p139, %s18, 1
          %p141 = scmp.lt.s32.totalorder %s138, 15
          %s142 = scalar_select %p141, %s138, 15
          %s143 = smul.addr %s140, 16
          %s144 = sadd.s32 %s142, %s143
          %s145 = smul.addr %s144, 8
          %s146 = scalar_lea.vmem %s0, %s145
          %s147 = smul.u32 16, %s19
        $region20: #{_prepare_and_cost.1} parent=15 // pred_fallthru
          _
        // Predicated region
        $region21: #{_prepare_and_cost.1} parent=15 // pred_check
          %p148 = pneg %p80
        $region22: #{_prepare_and_cost.1} parent=15 // pred_check_branch
          %150 = sbr.rel (%p148) target = $region24
        $region23: #{_prepare_and_cost.1} parent=15 // pred_region
          %p151 = scmp.lt.s32.totalorder %s18, 1
          %s152 = scalar_select %p151, %s18, 1
          %p153 = scmp.lt.s32.totalorder %s20, 0
          %s154 = scalar_select %p153, %s20, 0
          %s155 = sadd.s32 %s154, %s152
          %s156 = smul.addr %s155, 8
          %s157 = scalar_lea.vmem %s1, %s156
        $region24: #{_prepare_and_cost.1} parent=15 // pred_fallthru
          _
      $region16: #{_prepare_and_cost.1} parent=5 // pred_fallthru
        _
      %p158 = scmp.le.s32.totalorder 1, %s11
      %p159 = scmp.lt.s32.totalorder %s11, 3
      %p160 = pnand %p158, %p159
      %p161 = pneg %p160
      // Predicated region
      $region25: #{_prepare_and_cost.1} parent=5 // pred_check
        _
      $region26: #{_prepare_and_cost.1} parent=5 // pred_check_branch
        %163 = sbr.rel (%p160) target = $region28
      $region27: #{_prepare_and_cost.1} parent=5 // pred_region
        %s164 = ssub.s32 %s11, 1
        %s165 = smul.u32 16, %s22
        %p166 = scmp.lt.s32.totalorder %s21, 1
        %s167 = scalar_select %p166, %s21, 1
        %p168 = scmp.lt.s32.totalorder %s165, 15
        %s169 = scalar_select %p168, %s165, 15
        %s170 = smul.addr %s167, 16
        %s171 = sadd.s32 %s169, %s170
        %s172 = smul.addr %s171, 8
        %s173 = scalar_lea.vmem %s0, %s172
        %p174 = pneg %p58
        %p175 = pneg %p55
        %p176 = scmp.lt.s32.totalorder %s21, 1
        %s177 = scalar_select %p176, %s21, 1
        %p178 = scmp.lt.s32.totalorder %s23, 0
        %s179 = scalar_select %p178, %s23, 0
        %s180 = sadd.s32 %s179, %s177
        %s181 = smul.addr %s180, 8
        %s182 = scalar_lea.vmem %s1, %s181
        %p183 = pneg %p86
        %p184 = pneg %p83
        %p185 = pneg %p116
        %p186 = pneg %p113
        %s187 = sand.u32 %s103, 1
        %s188 = scalar_lea.sflag [#allocation3], %s187
        %s189 = sand.u32 %s103, 1
        %s190 = smul.addr %s189, 128
        %s191 = scalar_lea.vmem [#allocation2], %s190
        %s192 = smul.u32 16, %s22
        %p193 = scmp.lt.s32.totalorder %s21, 1
        %s194 = scalar_select %p193, %s21, 1
        %p195 = scmp.lt.s32.totalorder %s192, 15
        %s196 = scalar_select %p195, %s192, 15
        %s197 = smul.addr %s194, 16
        %s198 = sadd.s32 %s196, %s197
        %s199 = smul.addr %s198, 8
        %s200 = scalar_lea.vmem %s0, %s199
        %s201 = smul.u32 16, %s22
        %p202 = scmp.lt.s32.totalorder %s21, 1
        %s203 = scalar_select %p202, %s21, 1
        %p204 = scmp.lt.s32.totalorder %s23, 0
        %s205 = scalar_select %p204, %s23, 0
        %s206 = sadd.s32 %s205, %s203
        %s207 = smul.addr %s206, 8
        %s208 = scalar_lea.vmem %s1, %s207
        %s209 = smul.u32 16, %s22
        %v210 = vld [vmem:[%s200] sm:$0xff]
        %v211 = vld [vmem:[%s200 + $0x8] sm:$0xff]
        %v212 = vld [vmem:[%s200 + $0x10] sm:$0xff]
        %v213 = vld [vmem:[%s200 + $0x18] sm:$0xff]
        %v214 = vld [vmem:[%s200 + $0x20] sm:$0xff]
        %v215 = vld [vmem:[%s200 + $0x28] sm:$0xff]
        %v216 = vld [vmem:[%s200 + $0x30] sm:$0xff]
        %v217 = vld [vmem:[%s200 + $0x38] sm:$0xff]
        %v218 = vld [vmem:[%s200 + $0x40] sm:$0xff]
        %v219 = vld [vmem:[%s200 + $0x48] sm:$0xff]
        %v220 = vld [vmem:[%s200 + $0x50] sm:$0xff]
        %v221 = vld [vmem:[%s200 + $0x58] sm:$0xff]
        %v222 = vld [vmem:[%s200 + $0x60] sm:$0xff]
        %v223 = vld [vmem:[%s200 + $0x68] sm:$0xff]
        %v224 = vld [vmem:[%s200 + $0x70] sm:$0xff]
        %v225 = vld [vmem:[%s200 + $0x78] sm:$0xff]
        %v226 = vld [vmem:[%s208] sm:$0x1f]
        %v227 = vmul.f32 %v210, 2.0
        %v228 = vmul.f32 %v211, 2.0
        %v229 = vmul.f32 %v212, 2.0
        %v230 = vmul.f32 %v213, 2.0
        %v231 = vmul.f32 %v214, 2.0
        %v232 = vmul.f32 %v215, 2.0
        %v233 = vmul.f32 %v216, 2.0
        %v234 = vmul.f32 %v217, 2.0
        %v235 = vmul.f32 %v218, 2.0
        %v236 = vmul.f32 %v219, 2.0
        %v237 = vmul.f32 %v220, 2.0
        %v238 = vmul.f32 %v221, 2.0
        %v239 = vmul.f32 %v222, 2.0
        %v240 = vmul.f32 %v223, 2.0
        %v241 = vmul.f32 %v224, 2.0
        %v242 = vmul.f32 %v225, 2.0
        %v243 = vmul.f32 %v210, 0.5
        %v244 = vmul.f32 %v211, 0.5
        %v245 = vmul.f32 %v212, 0.5
        %v246 = vmul.f32 %v213, 0.5
        %v247 = vmul.f32 %v214, 0.5
        %v248 = vmul.f32 %v215, 0.5
        %v249 = vmul.f32 %v216, 0.5
        %v250 = vmul.f32 %v217, 0.5
        %v251 = vmul.f32 %v218, 0.5
        %v252 = vmul.f32 %v219, 0.5
        %v253 = vmul.f32 %v220, 0.5
        %v254 = vmul.f32 %v221, 0.5
        %v255 = vmul.f32 %v222, 0.5
        %v256 = vmul.f32 %v223, 0.5
        %v257 = vmul.f32 %v224, 0.5
        %v258 = vmul.f32 %v225, 0.5
        %v259 = vmul.f32 %v226, 2.0
        %v260 = vcvt.f32.s32.to.zero.pseudo %v226
        %v261 = vlaneseq
        %v262 = vshrl.u32 %v261, 7
        %v263 = vperm.slane %v260, 4
        %vm264 = vcmp.eq.s32.totalorder %v262, %v263
        %v265 = vsel %vm264, 0.5, 0.0
        %v266 = vmul.f32 %v210, %v210
        %v267 = vmul.f32 %v211, %v211
        %v268 = vmul.f32 %v212, %v212
        %v269 = vmul.f32 %v213, %v213
        %v270 = vmul.f32 %v214, %v214
        %v271 = vmul.f32 %v215, %v215
        %v272 = vmul.f32 %v216, %v216
        %v273 = vmul.f32 %v217, %v217
        %v274 = vmul.f32 %v218, %v218
        %v275 = vmul.f32 %v219, %v219
        %v276 = vmul.f32 %v220, %v220
        %v277 = vmul.f32 %v221, %v221
        %v278 = vmul.f32 %v222, %v222
        %v279 = vmul.f32 %v223, %v223
        %v280 = vmul.f32 %v224, %v224
        %v281 = vmul.f32 %v225, %v225
        %298 = vrot.lane.b32.xlu0 %v266, 127
        %v299 = vpop.permute.xlu0 %298
        %300 = vrot.lane.b32.xlu0 %v267, 127
        %v301 = vpop.permute.xlu0 %300
        %302 = vrot.lane.b32.xlu0 %v268, 127
        %v303 = vpop.permute.xlu0 %302
        %304 = vrot.lane.b32.xlu0 %v269, 127
        %v305 = vpop.permute.xlu0 %304
        %306 = vrot.lane.b32.xlu0 %v270, 127
        %v307 = vpop.permute.xlu0 %306
        %308 = vrot.lane.b32.xlu0 %v271, 127
        %v309 = vpop.permute.xlu0 %308
        %310 = vrot.lane.b32.xlu0 %v272, 127
        %v311 = vpop.permute.xlu0 %310
        %312 = vrot.lane.b32.xlu0 %v273, 127
        %v313 = vpop.permute.xlu0 %312
        %314 = vrot.lane.b32.xlu0 %v274, 127
        %v315 = vpop.permute.xlu0 %314
        %316 = vrot.lane.b32.xlu0 %v275, 127
        %v317 = vpop.permute.xlu0 %316
        %318 = vrot.lane.b32.xlu0 %v276, 127
        %v319 = vpop.permute.xlu0 %318
        %320 = vrot.lane.b32.xlu0 %v277, 127
        %v321 = vpop.permute.xlu0 %320
        %322 = vrot.lane.b32.xlu0 %v278, 127
        %v323 = vpop.permute.xlu0 %322
        %324 = vrot.lane.b32.xlu0 %v279, 127
        %v325 = vpop.permute.xlu0 %324
        %326 = vrot.lane.b32.xlu0 %v280, 127
        %v327 = vpop.permute.xlu0 %326
        %328 = vrot.lane.b32.xlu0 %v281, 127
        %v329 = vpop.permute.xlu0 %328
        %vm346 = vcmask 23552
        %v347 = vsel %vm346, %v299, 0.0
        %348 = vadd.xlane.f32.xlu0 %v347
        %v349 = vpop.xlane.xlu0 %348
        %v350 = vsel %vm346, %v301, 0.0
        %351 = vadd.xlane.f32.xlu0 %v350
        %v352 = vpop.xlane.xlu0 %351
        %v353 = vsel %vm346, %v303, 0.0
        %354 = vadd.xlane.f32.xlu0 %v353
        %v355 = vpop.xlane.xlu0 %354
        %v356 = vsel %vm346, %v305, 0.0
        %357 = vadd.xlane.f32.xlu0 %v356
        %v358 = vpop.xlane.xlu0 %357
        %v359 = vsel %vm346, %v307, 0.0
        %360 = vadd.xlane.f32.xlu0 %v359
        %v361 = vpop.xlane.xlu0 %360
        %v362 = vsel %vm346, %v309, 0.0
        %363 = vadd.xlane.f32.xlu0 %v362
        %v364 = vpop.xlane.xlu0 %363
        %v365 = vsel %vm346, %v311, 0.0
        %366 = vadd.xlane.f32.xlu0 %v365
        %v367 = vpop.xlane.xlu0 %366
        %v368 = vsel %vm346, %v313, 0.0
        %369 = vadd.xlane.f32.xlu0 %v368
        %v370 = vpop.xlane.xlu0 %369
        %v371 = vsel %vm346, %v315, 0.0
        %372 = vadd.xlane.f32.xlu0 %v371
        %v373 = vpop.xlane.xlu0 %372
        %v374 = vsel %vm346, %v317, 0.0
        %375 = vadd.xlane.f32.xlu0 %v374
        %v376 = vpop.xlane.xlu0 %375
        %v377 = vsel %vm346, %v319, 0.0
        %378 = vadd.xlane.f32.xlu0 %v377
        %v379 = vpop.xlane.xlu0 %378
        %v380 = vsel %vm346, %v321, 0.0
        %381 = vadd.xlane.f32.xlu0 %v380
        %v382 = vpop.xlane.xlu0 %381
        %v383 = vsel %vm346, %v323, 0.0
        %384 = vadd.xlane.f32.xlu0 %v383
        %v385 = vpop.xlane.xlu0 %384
        %v386 = vsel %vm346, %v325, 0.0
        %387 = vadd.xlane.f32.xlu0 %v386
        %v388 = vpop.xlane.xlu0 %387
        %v389 = vsel %vm346, %v327, 0.0
        %390 = vadd.xlane.f32.xlu0 %v389
        %v391 = vpop.xlane.xlu0 %390
        %v392 = vsel %vm346, %v329, 0.0
        %393 = vadd.xlane.f32.xlu0 %v392
        %v394 = vpop.xlane.xlu0 %393
        %v395 = vmul.f32 %v226, %v226
        %v397 = vrot.slane %v395, 1
        %vm399 = vcmask 1042432
        %v400 = vsel %vm399, %v397, 0.0
        %v401 = vrot.slane %v400, 4
        %v402 = vadd.f32 %v400, %v401
        %v403 = vrot.slane %v402, 2
        %v404 = vadd.f32 %v402, %v403
        %v405 = vrot.slane %v404, 1
        %v406 = vadd.f32 %v404, %v405
        %v407 = vmul.f32 %v210, -2.0
        %v408 = vmul.f32 %v211, -2.0
        %v409 = vmul.f32 %v212, -2.0
        %v410 = vmul.f32 %v213, -2.0
        %v411 = vmul.f32 %v214, -2.0
        %v412 = vmul.f32 %v215, -2.0
        %v413 = vmul.f32 %v216, -2.0
        %v414 = vmul.f32 %v217, -2.0
        %v415 = vmul.f32 %v218, -2.0
        %v416 = vmul.f32 %v219, -2.0
        %v417 = vmul.f32 %v220, -2.0
        %v418 = vmul.f32 %v221, -2.0
        %v419 = vmul.f32 %v222, -2.0
        %v420 = vmul.f32 %v223, -2.0
        %v421 = vmul.f32 %v224, -2.0
        %v422 = vmul.f32 %v225, -2.0
        %439 = vrot.lane.b32.xlu0 %v407, 127
        %v440 = vpop.permute.xlu0 %439
        %441 = vrot.lane.b32.xlu0 %v408, 127
        %v442 = vpop.permute.xlu0 %441
        %443 = vrot.lane.b32.xlu0 %v409, 127
        %v444 = vpop.permute.xlu0 %443
        %445 = vrot.lane.b32.xlu0 %v410, 127
        %v446 = vpop.permute.xlu0 %445
        %447 = vrot.lane.b32.xlu0 %v411, 127
        %v448 = vpop.permute.xlu0 %447
        %449 = vrot.lane.b32.xlu0 %v412, 127
        %v450 = vpop.permute.xlu0 %449
        %451 = vrot.lane.b32.xlu0 %v413, 127
        %v452 = vpop.permute.xlu0 %451
        %453 = vrot.lane.b32.xlu0 %v414, 127
        %v454 = vpop.permute.xlu0 %453
        %455 = vrot.lane.b32.xlu0 %v415, 127
        %v456 = vpop.permute.xlu0 %455
        %457 = vrot.lane.b32.xlu0 %v416, 127
        %v458 = vpop.permute.xlu0 %457
        %459 = vrot.lane.b32.xlu0 %v417, 127
        %v460 = vpop.permute.xlu0 %459
        %461 = vrot.lane.b32.xlu0 %v418, 127
        %v462 = vpop.permute.xlu0 %461
        %463 = vrot.lane.b32.xlu0 %v419, 127
        %v464 = vpop.permute.xlu0 %463
        %465 = vrot.lane.b32.xlu0 %v420, 127
        %v466 = vpop.permute.xlu0 %465
        %467 = vrot.lane.b32.xlu0 %v421, 127
        %v468 = vpop.permute.xlu0 %467
        %469 = vrot.lane.b32.xlu0 %v422, 127
        %v470 = vpop.permute.xlu0 %469
        %v472 = vrot.slane %v226, 1
        %v473 = vsel %vm346, %v440, 0
        %v475 = vsel %vm346, %v442, 0
        %v477 = vsel %vm346, %v444, 0
        %v479 = vsel %vm346, %v446, 0
        %v481 = vsel %vm346, %v448, 0
        %v483 = vsel %vm346, %v450, 0
        %v485 = vsel %vm346, %v452, 0
        %v487 = vsel %vm346, %v454, 0
        %v489 = vsel %vm346, %v456, 0
        %v491 = vsel %vm346, %v458, 0
        %v493 = vsel %vm346, %v460, 0
        %v495 = vsel %vm346, %v462, 0
        %v497 = vsel %vm346, %v464, 0
        %v499 = vsel %vm346, %v466, 0
        %v501 = vsel %vm346, %v468, 0
        %v503 = vsel %vm346, %v470, 0
        %v505 = vsel %vm399, %v472, 0
        %507 = vmatpush.msra.mxu0 0.0
        %508 = vmatpush.msra.mxu0 0.0
        %509 = vmatpush.msra.mxu0 0.0
        %510 = vmatpush.msra.mxu0 0.0
        %511 = vmatpush.msra.mxu0 0.0
        %512 = vmatpush.msra.mxu0 0.0
        %513 = vmatpush.msra.mxu0 0.0
        %514 = vmatpush.msra.mxu0 0.0
        %515 = vmatpush.msra.mxu0 0.0
        %516 = vmatpush.msra.mxu0 0.0
        %517 = vmatpush.msra.mxu0 0.0
        %518 = vmatpush.msra.mxu0 0.0
        %519 = vmatpush.msra.mxu0 0.0
        %520 = vmatpush.msra.mxu0 0.0
        %521 = vmatpush.msra.mxu0 0.0
        %522 = vmatpush.msra.mxu0 %v505
        %523 = vmatmul.f32.gmra.mxu0 %v473
        %v524 = vpop.f32.mrf.mxu0
        %v525 = vadd.f32 0.0, %v524
        %526 = vmatmul.f32.gmra.mxu0 %v475
        %v527 = vpop.f32.mrf.mxu0
        %v528 = vadd.f32 0.0, %v527
        %529 = vmatmul.f32.gmra.mxu0 %v477
        %v530 = vpop.f32.mrf.mxu0
        %v531 = vadd.f32 0.0, %v530
        %532 = vmatmul.f32.gmra.mxu0 %v479
        %v533 = vpop.f32.mrf.mxu0
        %v534 = vadd.f32 0.0, %v533
        %535 = vmatmul.f32.gmra.mxu0 %v481
        %v536 = vpop.f32.mrf.mxu0
        %v537 = vadd.f32 0.0, %v536
        %538 = vmatmul.f32.gmra.mxu0 %v483
        %v539 = vpop.f32.mrf.mxu0
        %v540 = vadd.f32 0.0, %v539
        %541 = vmatmul.f32.gmra.mxu0 %v485
        %v542 = vpop.f32.mrf.mxu0
        %v543 = vadd.f32 0.0, %v542
        %544 = vmatmul.f32.gmra.mxu0 %v487
        %v545 = vpop.f32.mrf.mxu0
        %v546 = vadd.f32 0.0, %v545
        %547 = vmatmul.f32.gmra.mxu0 %v489
        %v548 = vpop.f32.mrf.mxu0
        %v549 = vadd.f32 0.0, %v548
        %550 = vmatmul.f32.gmra.mxu0 %v491
        %v551 = vpop.f32.mrf.mxu0
        %v552 = vadd.f32 0.0, %v551
        %553 = vmatmul.f32.gmra.mxu0 %v493
        %v554 = vpop.f32.mrf.mxu0
        %v555 = vadd.f32 0.0, %v554
        %556 = vmatmul.f32.gmra.mxu0 %v495
        %v557 = vpop.f32.mrf.mxu0
        %v558 = vadd.f32 0.0, %v557
        %559 = vmatmul.f32.gmra.mxu0 %v497
        %v560 = vpop.f32.mrf.mxu0
        %v561 = vadd.f32 0.0, %v560
        %562 = vmatmul.f32.gmra.mxu0 %v499
        %v563 = vpop.f32.mrf.mxu0
        %v564 = vadd.f32 0.0, %v563
        %565 = vmatmul.f32.gmra.mxu0 %v501
        %v566 = vpop.f32.mrf.mxu0
        %v567 = vadd.f32 0.0, %v566
        %568 = vmatmul.f32.gmra.mxu0 %v503
        %v569 = vpop.f32.mrf.mxu0
        %v570 = vadd.f32 0.0, %v569
        %571 = vdwg.mxu0
        %v572 = vadd.f32 %v349, %v406
        %v573 = vadd.f32 %v352, %v406
        %v574 = vadd.f32 %v355, %v406
        %v575 = vadd.f32 %v358, %v406
        %v576 = vadd.f32 %v361, %v406
        %v577 = vadd.f32 %v364, %v406
        %v578 = vadd.f32 %v367, %v406
        %v579 = vadd.f32 %v370, %v406
        %v580 = vadd.f32 %v373, %v406
        %v581 = vadd.f32 %v376, %v406
        %v582 = vadd.f32 %v379, %v406
        %v583 = vadd.f32 %v382, %v406
        %v584 = vadd.f32 %v385, %v406
        %v585 = vadd.f32 %v388, %v406
        %v586 = vadd.f32 %v391, %v406
        %v587 = vadd.f32 %v394, %v406
        %v588 = vadd.f32 %v572, %v525
        %v589 = vadd.f32 %v573, %v528
        %v590 = vadd.f32 %v574, %v531
        %v591 = vadd.f32 %v575, %v534
        %v592 = vadd.f32 %v576, %v537
        %v593 = vadd.f32 %v577, %v540
        %v594 = vadd.f32 %v578, %v543
        %v595 = vadd.f32 %v579, %v546
        %v596 = vadd.f32 %v580, %v549
        %v597 = vadd.f32 %v581, %v552
        %v598 = vadd.f32 %v582, %v555
        %v599 = vadd.f32 %v583, %v558
        %v600 = vadd.f32 %v584, %v561
        %v601 = vadd.f32 %v585, %v564
        %v602 = vadd.f32 %v586, %v567
        %v603 = vadd.f32 %v587, %v570
        %v604 = vmax.f32 %v588, 0.0
        %v605 = vmax.f32 %v589, 0.0
        %v606 = vmax.f32 %v590, 0.0
        %v607 = vmax.f32 %v591, 0.0
        %v608 = vmax.f32 %v592, 0.0
        %v609 = vmax.f32 %v593, 0.0
        %v610 = vmax.f32 %v594, 0.0
        %v611 = vmax.f32 %v595, 0.0
        %v612 = vmax.f32 %v596, 0.0
        %v613 = vmax.f32 %v597, 0.0
        %v614 = vmax.f32 %v598, 0.0
        %v615 = vmax.f32 %v599, 0.0
        %v616 = vmax.f32 %v600, 0.0
        %v617 = vmax.f32 %v601, 0.0
        %v618 = vmax.f32 %v602, 0.0
        %v619 = vmax.f32 %v603, 0.0
        %v620 = vrsqrt.pop %v604
        %v621 = vmul.f32 %v620, %v604
        %v622 = vmul.f32 %v621, %v620
        %v623 = vmul.f32 0.5, %v622
        %v624 = vsub.f32 1.5, %v623
        %v625 = vmul.f32 %v620, %v624
        %v626 = vmul.f32 %v604, %v625
        %vm627 = vcmp.eq.f32.partialorder %v604, inf
        %v628 = vsel %vm627, %v604, %v626
        %vm629 = vcmp.eq.f32.partialorder %v604, 0.0
        %v630 = vand.u32 %v604, 2147483648
        %v631 = vsel %vm629, %v630, %v628
        %v632 = vrsqrt.pop %v605
        %v633 = vmul.f32 %v632, %v605
        %v634 = vmul.f32 %v633, %v632
        %v635 = vmul.f32 0.5, %v634
        %v636 = vsub.f32 1.5, %v635
        %v637 = vmul.f32 %v632, %v636
        %v638 = vmul.f32 %v605, %v637
        %vm639 = vcmp.eq.f32.partialorder %v605, inf
        %v640 = vsel %vm639, %v605, %v638
        %vm641 = vcmp.eq.f32.partialorder %v605, 0.0
        %v642 = vand.u32 %v605, 2147483648
        %v643 = vsel %vm641, %v642, %v640
        %v644 = vrsqrt.pop %v606
        %v645 = vmul.f32 %v644, %v606
        %v646 = vmul.f32 %v645, %v644
        %v647 = vmul.f32 0.5, %v646
        %v648 = vsub.f32 1.5, %v647
        %v649 = vmul.f32 %v644, %v648
        %v650 = vmul.f32 %v606, %v649
        %vm651 = vcmp.eq.f32.partialorder %v606, inf
        %v652 = vsel %vm651, %v606, %v650
        %vm653 = vcmp.eq.f32.partialorder %v606, 0.0
        %v654 = vand.u32 %v606, 2147483648
        %v655 = vsel %vm653, %v654, %v652
        %v656 = vrsqrt.pop %v607
        %v657 = vmul.f32 %v656, %v607
        %v658 = vmul.f32 %v657, %v656
        %v659 = vmul.f32 0.5, %v658
        %v660 = vsub.f32 1.5, %v659
        %v661 = vmul.f32 %v656, %v660
        %v662 = vmul.f32 %v607, %v661
        %vm663 = vcmp.eq.f32.partialorder %v607, inf
        %v664 = vsel %vm663, %v607, %v662
        %vm665 = vcmp.eq.f32.partialorder %v607, 0.0
        %v666 = vand.u32 %v607, 2147483648
        %v667 = vsel %vm665, %v666, %v664
        %v668 = vrsqrt.pop %v608
        %v669 = vmul.f32 %v668, %v608
        %v670 = vmul.f32 %v669, %v668
        %v671 = vmul.f32 0.5, %v670
        %v672 = vsub.f32 1.5, %v671
        %v673 = vmul.f32 %v668, %v672
        %v674 = vmul.f32 %v608, %v673
        %vm675 = vcmp.eq.f32.partialorder %v608, inf
        %v676 = vsel %vm675, %v608, %v674
        %vm677 = vcmp.eq.f32.partialorder %v608, 0.0
        %v678 = vand.u32 %v608, 2147483648
        %v679 = vsel %vm677, %v678, %v676
        %v680 = vrsqrt.pop %v609
        %v681 = vmul.f32 %v680, %v609
        %v682 = vmul.f32 %v681, %v680
        %v683 = vmul.f32 0.5, %v682
        %v684 = vsub.f32 1.5, %v683
        %v685 = vmul.f32 %v680, %v684
        %v686 = vmul.f32 %v609, %v685
        %vm687 = vcmp.eq.f32.partialorder %v609, inf
        %v688 = vsel %vm687, %v609, %v686
        %vm689 = vcmp.eq.f32.partialorder %v609, 0.0
        %v690 = vand.u32 %v609, 2147483648
        %v691 = vsel %vm689, %v690, %v688
        %v692 = vrsqrt.pop %v610
        %v693 = vmul.f32 %v692, %v610
        %v694 = vmul.f32 %v693, %v692
        %v695 = vmul.f32 0.5, %v694
        %v696 = vsub.f32 1.5, %v695
        %v697 = vmul.f32 %v692, %v696
        %v698 = vmul.f32 %v610, %v697
        %vm699 = vcmp.eq.f32.partialorder %v610, inf
        %v700 = vsel %vm699, %v610, %v698
        %vm701 = vcmp.eq.f32.partialorder %v610, 0.0
        %v702 = vand.u32 %v610, 2147483648
        %v703 = vsel %vm701, %v702, %v700
        %v704 = vrsqrt.pop %v611
        %v705 = vmul.f32 %v704, %v611
        %v706 = vmul.f32 %v705, %v704
        %v707 = vmul.f32 0.5, %v706
        %v708 = vsub.f32 1.5, %v707
        %v709 = vmul.f32 %v704, %v708
        %v710 = vmul.f32 %v611, %v709
        %vm711 = vcmp.eq.f32.partialorder %v611, inf
        %v712 = vsel %vm711, %v611, %v710
        %vm713 = vcmp.eq.f32.partialorder %v611, 0.0
        %v714 = vand.u32 %v611, 2147483648
        %v715 = vsel %vm713, %v714, %v712
        %v716 = vrsqrt.pop %v612
        %v717 = vmul.f32 %v716, %v612
        %v718 = vmul.f32 %v717, %v716
        %v719 = vmul.f32 0.5, %v718
        %v720 = vsub.f32 1.5, %v719
        %v721 = vmul.f32 %v716, %v720
        %v722 = vmul.f32 %v612, %v721
        %vm723 = vcmp.eq.f32.partialorder %v612, inf
        %v724 = vsel %vm723, %v612, %v722
        %vm725 = vcmp.eq.f32.partialorder %v612, 0.0
        %v726 = vand.u32 %v612, 2147483648
        %v727 = vsel %vm725, %v726, %v724
        %v728 = vrsqrt.pop %v613
        %v729 = vmul.f32 %v728, %v613
        %v730 = vmul.f32 %v729, %v728
        %v731 = vmul.f32 0.5, %v730
        %v732 = vsub.f32 1.5, %v731
        %v733 = vmul.f32 %v728, %v732
        %v734 = vmul.f32 %v613, %v733
        %vm735 = vcmp.eq.f32.partialorder %v613, inf
        %v736 = vsel %vm735, %v613, %v734
        %vm737 = vcmp.eq.f32.partialorder %v613, 0.0
        %v738 = vand.u32 %v613, 2147483648
        %v739 = vsel %vm737, %v738, %v736
        %v740 = vrsqrt.pop %v614
        %v741 = vmul.f32 %v740, %v614
        %v742 = vmul.f32 %v741, %v740
        %v743 = vmul.f32 0.5, %v742
        %v744 = vsub.f32 1.5, %v743
        %v745 = vmul.f32 %v740, %v744
        %v746 = vmul.f32 %v614, %v745
        %vm747 = vcmp.eq.f32.partialorder %v614, inf
        %v748 = vsel %vm747, %v614, %v746
        %vm749 = vcmp.eq.f32.partialorder %v614, 0.0
        %v750 = vand.u32 %v614, 2147483648
        %v751 = vsel %vm749, %v750, %v748
        %v752 = vrsqrt.pop %v615
        %v753 = vmul.f32 %v752, %v615
        %v754 = vmul.f32 %v753, %v752
        %v755 = vmul.f32 0.5, %v754
        %v756 = vsub.f32 1.5, %v755
        %v757 = vmul.f32 %v752, %v756
        %v758 = vmul.f32 %v615, %v757
        %vm759 = vcmp.eq.f32.partialorder %v615, inf
        %v760 = vsel %vm759, %v615, %v758
        %vm761 = vcmp.eq.f32.partialorder %v615, 0.0
        %v762 = vand.u32 %v615, 2147483648
        %v763 = vsel %vm761, %v762, %v760
        %v764 = vrsqrt.pop %v616
        %v765 = vmul.f32 %v764, %v616
        %v766 = vmul.f32 %v765, %v764
        %v767 = vmul.f32 0.5, %v766
        %v768 = vsub.f32 1.5, %v767
        %v769 = vmul.f32 %v764, %v768
        %v770 = vmul.f32 %v616, %v769
        %vm771 = vcmp.eq.f32.partialorder %v616, inf
        %v772 = vsel %vm771, %v616, %v770
        %vm773 = vcmp.eq.f32.partialorder %v616, 0.0
        %v774 = vand.u32 %v616, 2147483648
        %v775 = vsel %vm773, %v774, %v772
        %v776 = vrsqrt.pop %v617
        %v777 = vmul.f32 %v776, %v617
        %v778 = vmul.f32 %v777, %v776
        %v779 = vmul.f32 0.5, %v778
        %v780 = vsub.f32 1.5, %v779
        %v781 = vmul.f32 %v776, %v780
        %v782 = vmul.f32 %v617, %v781
        %vm783 = vcmp.eq.f32.partialorder %v617, inf
        %v784 = vsel %vm783, %v617, %v782
        %vm785 = vcmp.eq.f32.partialorder %v617, 0.0
        %v786 = vand.u32 %v617, 2147483648
        %v787 = vsel %vm785, %v786, %v784
        %v788 = vrsqrt.pop %v618
        %v789 = vmul.f32 %v788, %v618
        %v790 = vmul.f32 %v789, %v788
        %v791 = vmul.f32 0.5, %v790
        %v792 = vsub.f32 1.5, %v791
        %v793 = vmul.f32 %v788, %v792
        %v794 = vmul.f32 %v618, %v793
        %vm795 = vcmp.eq.f32.partialorder %v618, inf
        %v796 = vsel %vm795, %v618, %v794
        %vm797 = vcmp.eq.f32.partialorder %v618, 0.0
        %v798 = vand.u32 %v618, 2147483648
        %v799 = vsel %vm797, %v798, %v796
        %v800 = vrsqrt.pop %v619
        %v801 = vmul.f32 %v800, %v619
        %v802 = vmul.f32 %v801, %v800
        %v803 = vmul.f32 0.5, %v802
        %v804 = vsub.f32 1.5, %v803
        %v805 = vmul.f32 %v800, %v804
        %v806 = vmul.f32 %v619, %v805
        %vm807 = vcmp.eq.f32.partialorder %v619, inf
        %v808 = vsel %vm807, %v619, %v806
        %vm809 = vcmp.eq.f32.partialorder %v619, 0.0
        %v810 = vand.u32 %v619, 2147483648
        %v811 = vsel %vm809, %v810, %v808
        %v812 = vmul.f32 %v243, %v243
        %v813 = vmul.f32 %v244, %v244
        %v814 = vmul.f32 %v245, %v245
        %v815 = vmul.f32 %v246, %v246
        %v816 = vmul.f32 %v247, %v247
        %v817 = vmul.f32 %v248, %v248
        %v818 = vmul.f32 %v249, %v249
        %v819 = vmul.f32 %v250, %v250
        %v820 = vmul.f32 %v251, %v251
        %v821 = vmul.f32 %v252, %v252
        %v822 = vmul.f32 %v253, %v253
        %v823 = vmul.f32 %v254, %v254
        %v824 = vmul.f32 %v255, %v255
        %v825 = vmul.f32 %v256, %v256
        %v826 = vmul.f32 %v257, %v257
        %v827 = vmul.f32 %v258, %v258
        %844 = vrot.lane.b32.xlu0 %v812, 124
        %v845 = vpop.permute.xlu0 %844
        %846 = vrot.lane.b32.xlu0 %v813, 124
        %v847 = vpop.permute.xlu0 %846
        %848 = vrot.lane.b32.xlu0 %v814, 124
        %v849 = vpop.permute.xlu0 %848
        %850 = vrot.lane.b32.xlu0 %v815, 124
        %v851 = vpop.permute.xlu0 %850
        %852 = vrot.lane.b32.xlu0 %v816, 124
        %v853 = vpop.permute.xlu0 %852
        %854 = vrot.lane.b32.xlu0 %v817, 124
        %v855 = vpop.permute.xlu0 %854
        %856 = vrot.lane.b32.xlu0 %v818, 124
        %v857 = vpop.permute.xlu0 %856
        %858 = vrot.lane.b32.xlu0 %v819, 124
        %v859 = vpop.permute.xlu0 %858
        %860 = vrot.lane.b32.xlu0 %v820, 124
        %v861 = vpop.permute.xlu0 %860
        %862 = vrot.lane.b32.xlu0 %v821, 124
        %v863 = vpop.permute.xlu0 %862
        %864 = vrot.lane.b32.xlu0 %v822, 124
        %v865 = vpop.permute.xlu0 %864
        %866 = vrot.lane.b32.xlu0 %v823, 124
        %v867 = vpop.permute.xlu0 %866
        %868 = vrot.lane.b32.xlu0 %v824, 124
        %v869 = vpop.permute.xlu0 %868
        %870 = vrot.lane.b32.xlu0 %v825, 124
        %v871 = vpop.permute.xlu0 %870
        %872 = vrot.lane.b32.xlu0 %v826, 124
        %v873 = vpop.permute.xlu0 %872
        %874 = vrot.lane.b32.xlu0 %v827, 124
        %v875 = vpop.permute.xlu0 %874
        %v892 = vsel %vm346, %v845, 0.0
        %893 = vadd.xlane.f32.xlu0 %v892
        %v894 = vpop.xlane.xlu0 %893
        %v895 = vsel %vm346, %v847, 0.0
        %896 = vadd.xlane.f32.xlu0 %v895
        %v897 = vpop.xlane.xlu0 %896
        %v898 = vsel %vm346, %v849, 0.0
        %899 = vadd.xlane.f32.xlu0 %v898
        %v900 = vpop.xlane.xlu0 %899
        %v901 = vsel %vm346, %v851, 0.0
        %902 = vadd.xlane.f32.xlu0 %v901
        %v903 = vpop.xlane.xlu0 %902
        %v904 = vsel %vm346, %v853, 0.0
        %905 = vadd.xlane.f32.xlu0 %v904
        %v906 = vpop.xlane.xlu0 %905
        %v907 = vsel %vm346, %v855, 0.0
        %908 = vadd.xlane.f32.xlu0 %v907
        %v909 = vpop.xlane.xlu0 %908
        %v910 = vsel %vm346, %v857, 0.0
        %911 = vadd.xlane.f32.xlu0 %v910
        %v912 = vpop.xlane.xlu0 %911
        %v913 = vsel %vm346, %v859, 0.0
        %914 = vadd.xlane.f32.xlu0 %v913
        %v915 = vpop.xlane.xlu0 %914
        %v916 = vsel %vm346, %v861, 0.0
        %917 = vadd.xlane.f32.xlu0 %v916
        %v918 = vpop.xlane.xlu0 %917
        %v919 = vsel %vm346, %v863, 0.0
        %920 = vadd.xlane.f32.xlu0 %v919
        %v921 = vpop.xlane.xlu0 %920
        %v922 = vsel %vm346, %v865, 0.0
        %923 = vadd.xlane.f32.xlu0 %v922
        %v924 = vpop.xlane.xlu0 %923
        %v925 = vsel %vm346, %v867, 0.0
        %926 = vadd.xlane.f32.xlu0 %v925
        %v927 = vpop.xlane.xlu0 %926
        %v928 = vsel %vm346, %v869, 0.0
        %929 = vadd.xlane.f32.xlu0 %v928
        %v930 = vpop.xlane.xlu0 %929
        %v931 = vsel %vm346, %v871, 0.0
        %932 = vadd.xlane.f32.xlu0 %v931
        %v933 = vpop.xlane.xlu0 %932
        %v934 = vsel %vm346, %v873, 0.0
        %935 = vadd.xlane.f32.xlu0 %v934
        %v936 = vpop.xlane.xlu0 %935
        %v937 = vsel %vm346, %v875, 0.0
        %938 = vadd.xlane.f32.xlu0 %v937
        %v939 = vpop.xlane.xlu0 %938
        %v940 = vmul.f32 %v243, -2.0
        %v941 = vmul.f32 %v244, -2.0
        %v942 = vmul.f32 %v245, -2.0
        %v943 = vmul.f32 %v246, -2.0
        %v944 = vmul.f32 %v247, -2.0
        %v945 = vmul.f32 %v248, -2.0
        %v946 = vmul.f32 %v249, -2.0
        %v947 = vmul.f32 %v250, -2.0
        %v948 = vmul.f32 %v251, -2.0
        %v949 = vmul.f32 %v252, -2.0
        %v950 = vmul.f32 %v253, -2.0
        %v951 = vmul.f32 %v254, -2.0
        %v952 = vmul.f32 %v255, -2.0
        %v953 = vmul.f32 %v256, -2.0
        %v954 = vmul.f32 %v257, -2.0
        %v955 = vmul.f32 %v258, -2.0
        %972 = vrot.lane.b32.xlu0 %v940, 124
        %v973 = vpop.permute.xlu0 %972
        %974 = vrot.lane.b32.xlu0 %v941, 124
        %v975 = vpop.permute.xlu0 %974
        %976 = vrot.lane.b32.xlu0 %v942, 124
        %v977 = vpop.permute.xlu0 %976
        %978 = vrot.lane.b32.xlu0 %v943, 124
        %v979 = vpop.permute.xlu0 %978
        %980 = vrot.lane.b32.xlu0 %v944, 124
        %v981 = vpop.permute.xlu0 %980
        %982 = vrot.lane.b32.xlu0 %v945, 124
        %v983 = vpop.permute.xlu0 %982
        %984 = vrot.lane.b32.xlu0 %v946, 124
        %v985 = vpop.permute.xlu0 %984
        %986 = vrot.lane.b32.xlu0 %v947, 124
        %v987 = vpop.permute.xlu0 %986
        %988 = vrot.lane.b32.xlu0 %v948, 124
        %v989 = vpop.permute.xlu0 %988
        %990 = vrot.lane.b32.xlu0 %v949, 124
        %v991 = vpop.permute.xlu0 %990
        %992 = vrot.lane.b32.xlu0 %v950, 124
        %v993 = vpop.permute.xlu0 %992
        %994 = vrot.lane.b32.xlu0 %v951, 124
        %v995 = vpop.permute.xlu0 %994
        %996 = vrot.lane.b32.xlu0 %v952, 124
        %v997 = vpop.permute.xlu0 %996
        %998 = vrot.lane.b32.xlu0 %v953, 124
        %v999 = vpop.permute.xlu0 %998
        %1000 = vrot.lane.b32.xlu0 %v954, 124
        %v1001 = vpop.permute.xlu0 %1000
        %1002 = vrot.lane.b32.xlu0 %v955, 124
        %v1003 = vpop.permute.xlu0 %1002
        %v1004 = vsel %vm346, %v973, 0
        %v1006 = vsel %vm346, %v975, 0
        %v1008 = vsel %vm346, %v977, 0
        %v1010 = vsel %vm346, %v979, 0
        %v1012 = vsel %vm346, %v981, 0
        %v1014 = vsel %vm346, %v983, 0
        %v1016 = vsel %vm346, %v985, 0
        %v1018 = vsel %vm346, %v987, 0
        %v1020 = vsel %vm346, %v989, 0
        %v1022 = vsel %vm346, %v991, 0
        %v1024 = vsel %vm346, %v993, 0
        %v1026 = vsel %vm346, %v995, 0
        %v1028 = vsel %vm346, %v997, 0
        %v1030 = vsel %vm346, %v999, 0
        %v1032 = vsel %vm346, %v1001, 0
        %v1034 = vsel %vm346, %v1003, 0
        %v1037 = vsel %vm399, %v265, 0
        %1039 = vmatpush.msra.mxu0 0.0
        %1040 = vmatpush.msra.mxu0 0.0
        %1041 = vmatpush.msra.mxu0 0.0
        %1042 = vmatpush.msra.mxu0 0.0
        %1043 = vmatpush.msra.mxu0 0.0
        %1044 = vmatpush.msra.mxu0 0.0
        %1045 = vmatpush.msra.mxu0 0.0
        %1046 = vmatpush.msra.mxu0 0.0
        %1047 = vmatpush.msra.mxu0 0.0
        %1048 = vmatpush.msra.mxu0 0.0
        %1049 = vmatpush.msra.mxu0 0.0
        %1050 = vmatpush.msra.mxu0 0.0
        %1051 = vmatpush.msra.mxu0 0.0
        %1052 = vmatpush.msra.mxu0 0.0
        %1053 = vmatpush.msra.mxu0 0.0
        %1054 = vmatpush.msra.mxu0 %v1037
        %1055 = vmatmul.f32.gmra.mxu0 %v1004
        %v1056 = vpop.f32.mrf.mxu0
        %v1057 = vadd.f32 0.0, %v1056
        %1058 = vmatmul.f32.gmra.mxu0 %v1006
        %v1059 = vpop.f32.mrf.mxu0
        %v1060 = vadd.f32 0.0, %v1059
        %1061 = vmatmul.f32.gmra.mxu0 %v1008
        %v1062 = vpop.f32.mrf.mxu0
        %v1063 = vadd.f32 0.0, %v1062
        %1064 = vmatmul.f32.gmra.mxu0 %v1010
        %v1065 = vpop.f32.mrf.mxu0
        %v1066 = vadd.f32 0.0, %v1065
        %1067 = vmatmul.f32.gmra.mxu0 %v1012
        %v1068 = vpop.f32.mrf.mxu0
        %v1069 = vadd.f32 0.0, %v1068
        %1070 = vmatmul.f32.gmra.mxu0 %v1014
        %v1071 = vpop.f32.mrf.mxu0
        %v1072 = vadd.f32 0.0, %v1071
        %1073 = vmatmul.f32.gmra.mxu0 %v1016
        %v1074 = vpop.f32.mrf.mxu0
        %v1075 = vadd.f32 0.0, %v1074
        %1076 = vmatmul.f32.gmra.mxu0 %v1018
        %v1077 = vpop.f32.mrf.mxu0
        %v1078 = vadd.f32 0.0, %v1077
        %1079 = vmatmul.f32.gmra.mxu0 %v1020
        %v1080 = vpop.f32.mrf.mxu0
        %v1081 = vadd.f32 0.0, %v1080
        %1082 = vmatmul.f32.gmra.mxu0 %v1022
        %v1083 = vpop.f32.mrf.mxu0
        %v1084 = vadd.f32 0.0, %v1083
        %1085 = vmatmul.f32.gmra.mxu0 %v1024
        %v1086 = vpop.f32.mrf.mxu0
        %v1087 = vadd.f32 0.0, %v1086
        %1088 = vmatmul.f32.gmra.mxu0 %v1026
        %v1089 = vpop.f32.mrf.mxu0
        %v1090 = vadd.f32 0.0, %v1089
        %1091 = vmatmul.f32.gmra.mxu0 %v1028
        %v1092 = vpop.f32.mrf.mxu0
        %v1093 = vadd.f32 0.0, %v1092
        %1094 = vmatmul.f32.gmra.mxu0 %v1030
        %v1095 = vpop.f32.mrf.mxu0
        %v1096 = vadd.f32 0.0, %v1095
        %1097 = vmatmul.f32.gmra.mxu0 %v1032
        %v1098 = vpop.f32.mrf.mxu0
        %v1099 = vadd.f32 0.0, %v1098
        %1100 = vmatmul.f32.gmra.mxu0 %v1034
        %v1101 = vpop.f32.mrf.mxu0
        %v1102 = vadd.f32 0.0, %v1101
        %1103 = vdwg.mxu0
        %v1104 = vadd.f32 %v894, 0.25
        %v1105 = vadd.f32 %v897, 0.25
        %v1106 = vadd.f32 %v900, 0.25
        %v1107 = vadd.f32 %v903, 0.25
        %v1108 = vadd.f32 %v906, 0.25
        %v1109 = vadd.f32 %v909, 0.25
        %v1110 = vadd.f32 %v912, 0.25
        %v1111 = vadd.f32 %v915, 0.25
        %v1112 = vadd.f32 %v918, 0.25
        %v1113 = vadd.f32 %v921, 0.25
        %v1114 = vadd.f32 %v924, 0.25
        %v1115 = vadd.f32 %v927, 0.25
        %v1116 = vadd.f32 %v930, 0.25
        %v1117 = vadd.f32 %v933, 0.25
        %v1118 = vadd.f32 %v936, 0.25
        %v1119 = vadd.f32 %v939, 0.25
        %v1120 = vadd.f32 %v1104, %v1057
        %v1121 = vadd.f32 %v1105, %v1060
        %v1122 = vadd.f32 %v1106, %v1063
        %v1123 = vadd.f32 %v1107, %v1066
        %v1124 = vadd.f32 %v1108, %v1069
        %v1125 = vadd.f32 %v1109, %v1072
        %v1126 = vadd.f32 %v1110, %v1075
        %v1127 = vadd.f32 %v1111, %v1078
        %v1128 = vadd.f32 %v1112, %v1081
        %v1129 = vadd.f32 %v1113, %v1084
        %v1130 = vadd.f32 %v1114, %v1087
        %v1131 = vadd.f32 %v1115, %v1090
        %v1132 = vadd.f32 %v1116, %v1093
        %v1133 = vadd.f32 %v1117, %v1096
        %v1134 = vadd.f32 %v1118, %v1099
        %v1135 = vadd.f32 %v1119, %v1102
        %v1136 = vmax.f32 %v1120, 0.0
        %v1137 = vmax.f32 %v1121, 0.0
        %v1138 = vmax.f32 %v1122, 0.0
        %v1139 = vmax.f32 %v1123, 0.0
        %v1140 = vmax.f32 %v1124, 0.0
        %v1141 = vmax.f32 %v1125, 0.0
        %v1142 = vmax.f32 %v1126, 0.0
        %v1143 = vmax.f32 %v1127, 0.0
        %v1144 = vmax.f32 %v1128, 0.0
        %v1145 = vmax.f32 %v1129, 0.0
        %v1146 = vmax.f32 %v1130, 0.0
        %v1147 = vmax.f32 %v1131, 0.0
        %v1148 = vmax.f32 %v1132, 0.0
        %v1149 = vmax.f32 %v1133, 0.0
        %v1150 = vmax.f32 %v1134, 0.0
        %v1151 = vmax.f32 %v1135, 0.0
        %v1152 = vrsqrt.pop %v1136
        %v1153 = vmul.f32 %v1152, %v1136
        %v1154 = vmul.f32 %v1153, %v1152
        %v1155 = vmul.f32 0.5, %v1154
        %v1156 = vsub.f32 1.5, %v1155
        %v1157 = vmul.f32 %v1152, %v1156
        %v1158 = vmul.f32 %v1136, %v1157
        %vm1159 = vcmp.eq.f32.partialorder %v1136, inf
        %v1160 = vsel %vm1159, %v1136, %v1158
        %vm1161 = vcmp.eq.f32.partialorder %v1136, 0.0
        %v1162 = vand.u32 %v1136, 2147483648
        %v1163 = vsel %vm1161, %v1162, %v1160
        %v1164 = vrsqrt.pop %v1137
        %v1165 = vmul.f32 %v1164, %v1137
        %v1166 = vmul.f32 %v1165, %v1164
        %v1167 = vmul.f32 0.5, %v1166
        %v1168 = vsub.f32 1.5, %v1167
        %v1169 = vmul.f32 %v1164, %v1168
        %v1170 = vmul.f32 %v1137, %v1169
        %vm1171 = vcmp.eq.f32.partialorder %v1137, inf
        %v1172 = vsel %vm1171, %v1137, %v1170
        %vm1173 = vcmp.eq.f32.partialorder %v1137, 0.0
        %v1174 = vand.u32 %v1137, 2147483648
        %v1175 = vsel %vm1173, %v1174, %v1172
        %v1176 = vrsqrt.pop %v1138
        %v1177 = vmul.f32 %v1176, %v1138
        %v1178 = vmul.f32 %v1177, %v1176
        %v1179 = vmul.f32 0.5, %v1178
        %v1180 = vsub.f32 1.5, %v1179
        %v1181 = vmul.f32 %v1176, %v1180
        %v1182 = vmul.f32 %v1138, %v1181
        %vm1183 = vcmp.eq.f32.partialorder %v1138, inf
        %v1184 = vsel %vm1183, %v1138, %v1182
        %vm1185 = vcmp.eq.f32.partialorder %v1138, 0.0
        %v1186 = vand.u32 %v1138, 2147483648
        %v1187 = vsel %vm1185, %v1186, %v1184
        %v1188 = vrsqrt.pop %v1139
        %v1189 = vmul.f32 %v1188, %v1139
        %v1190 = vmul.f32 %v1189, %v1188
        %v1191 = vmul.f32 0.5, %v1190
        %v1192 = vsub.f32 1.5, %v1191
        %v1193 = vmul.f32 %v1188, %v1192
        %v1194 = vmul.f32 %v1139, %v1193
        %vm1195 = vcmp.eq.f32.partialorder %v1139, inf
        %v1196 = vsel %vm1195, %v1139, %v1194
        %vm1197 = vcmp.eq.f32.partialorder %v1139, 0.0
        %v1198 = vand.u32 %v1139, 2147483648
        %v1199 = vsel %vm1197, %v1198, %v1196
        %v1200 = vrsqrt.pop %v1140
        %v1201 = vmul.f32 %v1200, %v1140
        %v1202 = vmul.f32 %v1201, %v1200
        %v1203 = vmul.f32 0.5, %v1202
        %v1204 = vsub.f32 1.5, %v1203
        %v1205 = vmul.f32 %v1200, %v1204
        %v1206 = vmul.f32 %v1140, %v1205
        %vm1207 = vcmp.eq.f32.partialorder %v1140, inf
        %v1208 = vsel %vm1207, %v1140, %v1206
        %vm1209 = vcmp.eq.f32.partialorder %v1140, 0.0
        %v1210 = vand.u32 %v1140, 2147483648
        %v1211 = vsel %vm1209, %v1210, %v1208
        %v1212 = vrsqrt.pop %v1141
        %v1213 = vmul.f32 %v1212, %v1141
        %v1214 = vmul.f32 %v1213, %v1212
        %v1215 = vmul.f32 0.5, %v1214
        %v1216 = vsub.f32 1.5, %v1215
        %v1217 = vmul.f32 %v1212, %v1216
        %v1218 = vmul.f32 %v1141, %v1217
        %vm1219 = vcmp.eq.f32.partialorder %v1141, inf
        %v1220 = vsel %vm1219, %v1141, %v1218
        %vm1221 = vcmp.eq.f32.partialorder %v1141, 0.0
        %v1222 = vand.u32 %v1141, 2147483648
        %v1223 = vsel %vm1221, %v1222, %v1220
        %v1224 = vrsqrt.pop %v1142
        %v1225 = vmul.f32 %v1224, %v1142
        %v1226 = vmul.f32 %v1225, %v1224
        %v1227 = vmul.f32 0.5, %v1226
        %v1228 = vsub.f32 1.5, %v1227
        %v1229 = vmul.f32 %v1224, %v1228
        %v1230 = vmul.f32 %v1142, %v1229
        %vm1231 = vcmp.eq.f32.partialorder %v1142, inf
        %v1232 = vsel %vm1231, %v1142, %v1230
        %vm1233 = vcmp.eq.f32.partialorder %v1142, 0.0
        %v1234 = vand.u32 %v1142, 2147483648
        %v1235 = vsel %vm1233, %v1234, %v1232
        %v1236 = vrsqrt.pop %v1143
        %v1237 = vmul.f32 %v1236, %v1143
        %v1238 = vmul.f32 %v1237, %v1236
        %v1239 = vmul.f32 0.5, %v1238
        %v1240 = vsub.f32 1.5, %v1239
        %v1241 = vmul.f32 %v1236, %v1240
        %v1242 = vmul.f32 %v1143, %v1241
        %vm1243 = vcmp.eq.f32.partialorder %v1143, inf
        %v1244 = vsel %vm1243, %v1143, %v1242
        %vm1245 = vcmp.eq.f32.partialorder %v1143, 0.0
        %v1246 = vand.u32 %v1143, 2147483648
        %v1247 = vsel %vm1245, %v1246, %v1244
        %v1248 = vrsqrt.pop %v1144
        %v1249 = vmul.f32 %v1248, %v1144
        %v1250 = vmul.f32 %v1249, %v1248
        %v1251 = vmul.f32 0.5, %v1250
        %v1252 = vsub.f32 1.5, %v1251
        %v1253 = vmul.f32 %v1248, %v1252
        %v1254 = vmul.f32 %v1144, %v1253
        %vm1255 = vcmp.eq.f32.partialorder %v1144, inf
        %v1256 = vsel %vm1255, %v1144, %v1254
        %vm1257 = vcmp.eq.f32.partialorder %v1144, 0.0
        %v1258 = vand.u32 %v1144, 2147483648
        %v1259 = vsel %vm1257, %v1258, %v1256
        %v1260 = vrsqrt.pop %v1145
        %v1261 = vmul.f32 %v1260, %v1145
        %v1262 = vmul.f32 %v1261, %v1260
        %v1263 = vmul.f32 0.5, %v1262
        %v1264 = vsub.f32 1.5, %v1263
        %v1265 = vmul.f32 %v1260, %v1264
        %v1266 = vmul.f32 %v1145, %v1265
        %vm1267 = vcmp.eq.f32.partialorder %v1145, inf
        %v1268 = vsel %vm1267, %v1145, %v1266
        %vm1269 = vcmp.eq.f32.partialorder %v1145, 0.0
        %v1270 = vand.u32 %v1145, 2147483648
        %v1271 = vsel %vm1269, %v1270, %v1268
        %v1272 = vrsqrt.pop %v1146
        %v1273 = vmul.f32 %v1272, %v1146
        %v1274 = vmul.f32 %v1273, %v1272
        %v1275 = vmul.f32 0.5, %v1274
        %v1276 = vsub.f32 1.5, %v1275
        %v1277 = vmul.f32 %v1272, %v1276
        %v1278 = vmul.f32 %v1146, %v1277
        %vm1279 = vcmp.eq.f32.partialorder %v1146, inf
        %v1280 = vsel %vm1279, %v1146, %v1278
        %vm1281 = vcmp.eq.f32.partialorder %v1146, 0.0
        %v1282 = vand.u32 %v1146, 2147483648
        %v1283 = vsel %vm1281, %v1282, %v1280
        %v1284 = vrsqrt.pop %v1147
        %v1285 = vmul.f32 %v1284, %v1147
        %v1286 = vmul.f32 %v1285, %v1284
        %v1287 = vmul.f32 0.5, %v1286
        %v1288 = vsub.f32 1.5, %v1287
        %v1289 = vmul.f32 %v1284, %v1288
        %v1290 = vmul.f32 %v1147, %v1289
        %vm1291 = vcmp.eq.f32.partialorder %v1147, inf
        %v1292 = vsel %vm1291, %v1147, %v1290
        %vm1293 = vcmp.eq.f32.partialorder %v1147, 0.0
        %v1294 = vand.u32 %v1147, 2147483648
        %v1295 = vsel %vm1293, %v1294, %v1292
        %v1296 = vrsqrt.pop %v1148
        %v1297 = vmul.f32 %v1296, %v1148
        %v1298 = vmul.f32 %v1297, %v1296
        %v1299 = vmul.f32 0.5, %v1298
        %v1300 = vsub.f32 1.5, %v1299
        %v1301 = vmul.f32 %v1296, %v1300
        %v1302 = vmul.f32 %v1148, %v1301
        %vm1303 = vcmp.eq.f32.partialorder %v1148, inf
        %v1304 = vsel %vm1303, %v1148, %v1302
        %vm1305 = vcmp.eq.f32.partialorder %v1148, 0.0
        %v1306 = vand.u32 %v1148, 2147483648
        %v1307 = vsel %vm1305, %v1306, %v1304
        %v1308 = vrsqrt.pop %v1149
        %v1309 = vmul.f32 %v1308, %v1149
        %v1310 = vmul.f32 %v1309, %v1308
        %v1311 = vmul.f32 0.5, %v1310
        %v1312 = vsub.f32 1.5, %v1311
        %v1313 = vmul.f32 %v1308, %v1312
        %v1314 = vmul.f32 %v1149, %v1313
        %vm1315 = vcmp.eq.f32.partialorder %v1149, inf
        %v1316 = vsel %vm1315, %v1149, %v1314
        %vm1317 = vcmp.eq.f32.partialorder %v1149, 0.0
        %v1318 = vand.u32 %v1149, 2147483648
        %v1319 = vsel %vm1317, %v1318, %v1316
        %v1320 = vrsqrt.pop %v1150
        %v1321 = vmul.f32 %v1320, %v1150
        %v1322 = vmul.f32 %v1321, %v1320
        %v1323 = vmul.f32 0.5, %v1322
        %v1324 = vsub.f32 1.5, %v1323
        %v1325 = vmul.f32 %v1320, %v1324
        %v1326 = vmul.f32 %v1150, %v1325
        %vm1327 = vcmp.eq.f32.partialorder %v1150, inf
        %v1328 = vsel %vm1327, %v1150, %v1326
        %vm1329 = vcmp.eq.f32.partialorder %v1150, 0.0
        %v1330 = vand.u32 %v1150, 2147483648
        %v1331 = vsel %vm1329, %v1330, %v1328
        %v1332 = vrsqrt.pop %v1151
        %v1333 = vmul.f32 %v1332, %v1151
        %v1334 = vmul.f32 %v1333, %v1332
        %v1335 = vmul.f32 0.5, %v1334
        %v1336 = vsub.f32 1.5, %v1335
        %v1337 = vmul.f32 %v1332, %v1336
        %v1338 = vmul.f32 %v1151, %v1337
        %vm1339 = vcmp.eq.f32.partialorder %v1151, inf
        %v1340 = vsel %vm1339, %v1151, %v1338
        %vm1341 = vcmp.eq.f32.partialorder %v1151, 0.0
        %v1342 = vand.u32 %v1151, 2147483648
        %v1343 = vsel %vm1341, %v1342, %v1340
        %1345 = vset.pattern.permute.xlu0 0
        %1346 = vperm.xlu0 %1345, %v227
        %v1347 = vpop.permute.xlu0 %1346
        %1350 = vset.pattern.permute.xlu0 0
        %1351 = vperm.xlu0 %1350, %v228
        %v1352 = vpop.permute.xlu0 %1351
        %1355 = vset.pattern.permute.xlu0 0
        %1356 = vperm.xlu0 %1355, %v229
        %v1357 = vpop.permute.xlu0 %1356
        %1360 = vset.pattern.permute.xlu0 0
        %1361 = vperm.xlu0 %1360, %v230
        %v1362 = vpop.permute.xlu0 %1361
        %1365 = vset.pattern.permute.xlu0 0
        %1366 = vperm.xlu0 %1365, %v231
        %v1367 = vpop.permute.xlu0 %1366
        %1370 = vset.pattern.permute.xlu0 0
        %1371 = vperm.xlu0 %1370, %v232
        %v1372 = vpop.permute.xlu0 %1371
        %1375 = vset.pattern.permute.xlu0 0
        %1376 = vperm.xlu0 %1375, %v233
        %v1377 = vpop.permute.xlu0 %1376
        %1380 = vset.pattern.permute.xlu0 0
        %1381 = vperm.xlu0 %1380, %v234
        %v1382 = vpop.permute.xlu0 %1381
        %1385 = vset.pattern.permute.xlu0 0
        %1386 = vperm.xlu0 %1385, %v235
        %v1387 = vpop.permute.xlu0 %1386
        %1390 = vset.pattern.permute.xlu0 0
        %1391 = vperm.xlu0 %1390, %v236
        %v1392 = vpop.permute.xlu0 %1391
        %1395 = vset.pattern.permute.xlu0 0
        %1396 = vperm.xlu0 %1395, %v237
        %v1397 = vpop.permute.xlu0 %1396
        %1400 = vset.pattern.permute.xlu0 0
        %1401 = vperm.xlu0 %1400, %v238
        %v1402 = vpop.permute.xlu0 %1401
        %1405 = vset.pattern.permute.xlu0 0
        %1406 = vperm.xlu0 %1405, %v239
        %v1407 = vpop.permute.xlu0 %1406
        %1410 = vset.pattern.permute.xlu0 0
        %1411 = vperm.xlu0 %1410, %v240
        %v1412 = vpop.permute.xlu0 %1411
        %1415 = vset.pattern.permute.xlu0 0
        %1416 = vperm.xlu0 %1415, %v241
        %v1417 = vpop.permute.xlu0 %1416
        %1420 = vset.pattern.permute.xlu0 0
        %1421 = vperm.xlu0 %1420, %v242
        %v1422 = vpop.permute.xlu0 %1421
        %v1424 = vperm.slane %v259, 0
        %v1425 = vsub.f32 %v1347, %v1424
        %v1426 = vsub.f32 %v1352, %v1424
        %v1427 = vsub.f32 %v1357, %v1424
        %v1428 = vsub.f32 %v1362, %v1424
        %v1429 = vsub.f32 %v1367, %v1424
        %v1430 = vsub.f32 %v1372, %v1424
        %v1431 = vsub.f32 %v1377, %v1424
        %v1432 = vsub.f32 %v1382, %v1424
        %v1433 = vsub.f32 %v1387, %v1424
        %v1434 = vsub.f32 %v1392, %v1424
        %v1435 = vsub.f32 %v1397, %v1424
        %v1436 = vsub.f32 %v1402, %v1424
        %v1437 = vsub.f32 %v1407, %v1424
        %v1438 = vsub.f32 %v1412, %v1424
        %v1439 = vsub.f32 %v1417, %v1424
        %v1440 = vsub.f32 %v1422, %v1424
        %v1441 = vand.u32 2147483647, %v1425
        %v1442 = vand.u32 2147483647, %v1426
        %v1443 = vand.u32 2147483647, %v1427
        %v1444 = vand.u32 2147483647, %v1428
        %v1445 = vand.u32 2147483647, %v1429
        %v1446 = vand.u32 2147483647, %v1430
        %v1447 = vand.u32 2147483647, %v1431
        %v1448 = vand.u32 2147483647, %v1432
        %v1449 = vand.u32 2147483647, %v1433
        %v1450 = vand.u32 2147483647, %v1434
        %v1451 = vand.u32 2147483647, %v1435
        %v1452 = vand.u32 2147483647, %v1436
        %v1453 = vand.u32 2147483647, %v1437
        %v1454 = vand.u32 2147483647, %v1438
        %v1455 = vand.u32 2147483647, %v1439
        %v1456 = vand.u32 2147483647, %v1440
        %v1457 = vadd.f32 %v1441, %v631
        %v1458 = vadd.f32 %v1442, %v643
        %v1459 = vadd.f32 %v1443, %v655
        %v1460 = vadd.f32 %v1444, %v667
        %v1461 = vadd.f32 %v1445, %v679
        %v1462 = vadd.f32 %v1446, %v691
        %v1463 = vadd.f32 %v1447, %v703
        %v1464 = vadd.f32 %v1448, %v715
        %v1465 = vadd.f32 %v1449, %v727
        %v1466 = vadd.f32 %v1450, %v739
        %v1467 = vadd.f32 %v1451, %v751
        %v1468 = vadd.f32 %v1452, %v763
        %v1469 = vadd.f32 %v1453, %v775
        %v1470 = vadd.f32 %v1454, %v787
        %v1471 = vadd.f32 %v1455, %v799
        %v1472 = vadd.f32 %v1456, %v811
        %v1473 = vadd.f32 %v1457, %v1163
        %v1474 = vadd.f32 %v1458, %v1175
        %v1475 = vadd.f32 %v1459, %v1187
        %v1476 = vadd.f32 %v1460, %v1199
        %v1477 = vadd.f32 %v1461, %v1211
        %v1478 = vadd.f32 %v1462, %v1223
        %v1479 = vadd.f32 %v1463, %v1235
        %v1480 = vadd.f32 %v1464, %v1247
        %v1481 = vadd.f32 %v1465, %v1259
        %v1482 = vadd.f32 %v1466, %v1271
        %v1483 = vadd.f32 %v1467, %v1283
        %v1484 = vadd.f32 %v1468, %v1295
        %v1485 = vadd.f32 %v1469, %v1307
        %v1486 = vadd.f32 %v1470, %v1319
        %v1487 = vadd.f32 %v1471, %v1331
        %v1488 = vadd.f32 %v1472, %v1343
        %1489 = vst [vmem:[%s191] sm:$0xff] %v1473
        %1490 = vst [vmem:[%s191 + $0x8] sm:$0xff] %v1474
        %1491 = vst [vmem:[%s191 + $0x10] sm:$0xff] %v1475
        %1492 = vst [vmem:[%s191 + $0x18] sm:$0xff] %v1476
        %1493 = vst [vmem:[%s191 + $0x20] sm:$0xff] %v1477
        %1494 = vst [vmem:[%s191 + $0x28] sm:$0xff] %v1478
        %1495 = vst [vmem:[%s191 + $0x30] sm:$0xff] %v1479
        %1496 = vst [vmem:[%s191 + $0x38] sm:$0xff] %v1480
        %1497 = vst [vmem:[%s191 + $0x40] sm:$0xff] %v1481
        %1498 = vst [vmem:[%s191 + $0x48] sm:$0xff] %v1482
        %1499 = vst [vmem:[%s191 + $0x50] sm:$0xff] %v1483
        %1500 = vst [vmem:[%s191 + $0x58] sm:$0xff] %v1484
        %1501 = vst [vmem:[%s191 + $0x60] sm:$0xff] %v1485
        %1502 = vst [vmem:[%s191 + $0x68] sm:$0xff] %v1486
        %1503 = vst [vmem:[%s191 + $0x70] sm:$0xff] %v1487
        %1504 = vst [vmem:[%s191 + $0x78] sm:$0xff] %v1488
        %s1505 = sand.u32 %s103, 1
        %s1506 = scalar_lea.sflag [#allocation3], %s1505
        %s1507 = sand.u32 %s103, 1
        %s1508 = smul.addr %s1507, 128
        %s1509 = scalar_lea.vmem [#allocation2], %s1508
        // Predicated region
        $region29: #{_prepare_and_cost.1} parent=27 // pred_check
          %p1510 = pneg %p113
        $region30: #{_prepare_and_cost.1} parent=27 // pred_check_branch
          %1512 = sbr.rel (%p1510) target = $region32
        $region31: #{_prepare_and_cost.1} parent=27 // pred_region
          %s1513 = smul.u32 16, %s22
          %1515 = vsyncadd %s1506, 0
          %s1516 = sadd.s32 %s23, %s1513
          %s1517 = smul.addr %s21, 16
          %s1518 = sadd.s32 %s1516, %s1517
          %s1519 = smul.addr %s1518, 8
          %s1520 = scalar_lea.hbm %s2, %s1519
          %s1521 = sshll.u32 %s1509, 4
          %s1522 = int_to_ptr.vmem [resolvable:$true] %s1521
          %s1523 = sshll.u32 %s1520, 4
          %s1524 = int_to_ptr.hbm [resolvable:$true] %s1523
          %1529 = dma.vmem_to_hbm [thread:$0]  %s1522, 2048, %s1524, %s1506, 128, 128, 8
        $region32: #{_prepare_and_cost.1} parent=27 // pred_fallthru
          _
      $region28: #{_prepare_and_cost.1} parent=5 // pred_fallthru
        _
      %p1530 = scmp.le.s32.totalorder 2, %s11
      // Predicated region
      $region33: #{_prepare_and_cost.1} parent=5 // pred_check
        %p1531 = pneg %p1530
      $region34: #{_prepare_and_cost.1} parent=5 // pred_check_branch
        %1533 = sbr.rel (%p1531) target = $region36
      $region35: #{_prepare_and_cost.1} parent=5 // pred_region
        %s1534 = ssub.s32 %s11, 2
        // Predicated region
        $region37: #{_prepare_and_cost.1} parent=35 // pred_check
          %p1535 = pneg %p119
        $region38: #{_prepare_and_cost.1} parent=35 // pred_check_branch
          %1537 = sbr.rel (%p1535) target = $region40
        $region39: #{_prepare_and_cost.1} parent=35 // pred_region
          %s1538 = sand.u32 %s104, 1
          %s1539 = scalar_lea.sflag [#allocation3], %s1538
          %s1540 = sand.u32 %s104, 1
          %s1541 = smul.addr %s1540, 128
          %s1542 = scalar_lea.vmem [#allocation2], %s1541
          %1544 = dma.done %s1539, 2048
        $region40: #{_prepare_and_cost.1} parent=35 // pred_fallthru
          _
      $region36: #{_prepare_and_cost.1} parent=5 // pred_fallthru
        _
    $region6: #{_prepare_and_cost.1} parent=1 // loop_footer
      %s15 = sadd.s32 1, %s11
    $region7: #{_prepare_and_cost.1} parent=1 // loop_footer_branch
      %10 = sbr.rel target = $region3
    $region8: #{_prepare_and_cost.1} parent=1 // loop_exit
      _
    %1545 = vsyncpa [#allocation3], 1
    %s1546 = scalar_lea.sflag [#allocation3], 1
    %1547 = vsyncpa %s1546, 1

</llo_original>
